<compile_context>
chip_gen: v6e
topology: v6e:2x2x1
jax: 0.10.0
libtpu: 0.0.40
codegen_flags: <defaults>
</compile_context>

<pallas_src>
import jax
import jax.numpy as jnp
from jax.experimental import pallas as pl
from jax.experimental.pallas import tpu as pltpu


def _round_up(x: int, m: int) -> int:
    return ((x + m - 1) // m) * m


def _vmem_estimate(D: int, K: int, T: int) -> int:
    """Rough VMEM working-set estimate (bytes) for one grid step."""
    blocks = 2 * (D * T * 4) * 2 + 2 * T * 4            # dbl-buffered x/q blocks + idx block
    codebook = 2 * (K * (D + 1) * 2 + 2 * K * D * 2)    # dbl-buffered bf16 codebook inputs
    interm = 4 * K * T * 4                               # ~4 live (K, T) f32-equivalents
    return blocks + codebook + interm


def _choose_tile(hwp: int, batch: int, K: int, D: int) -> int:
    """Pick a lane-dense pixel tile: K-/VMEM-aware, megacore-friendly."""
    cands = [t for t in range(128, min(1024, hwp) + 1, 128) if hwp % t == 0]
    cands.sort(reverse=True)                 # largest first
    if not cands:                            # hwp is always a multiple of 128, but be safe
        return hwp
    budget = 18 << 20                        # v7x-safe: < ~1/3 of 64 MiB per-TC VMEM
    tile = cands[-1]
    for t in cands:
        if _vmem_estimate(D, K, t) <= budget:
            tile = t
            break
    # Prefer >= 4 grid programs (2 TCs on v7x + software pipelining of DMAs)
    # by shrinking the tile while keeping it a lane-dense divisor of hwp.
    for t in cands:
        if t <= tile and batch * (hwp // t) >= 4:
            return t
    # Cannot reach 4 programs: use the smallest lane-dense tile for max overlap.
    return cands[-1]


def _vq_kernel(x_ref, e_aug_ref, e_hi_ref, e_lo_ref, q_ref, idx_ref):
    # x_ref:     (1, D, T)   input pixels, channels on sublanes, pixels on lanes
    # e_aug_ref: (K, D+1)    bf16 [-E_k | 0.5*||E_k||^2] (bias folded into matmul)
    # e_hi_ref:  (D, K)      bf16 high half of the f32 codebook (transposed)
    # e_lo_ref:  (D, K)      bf16 low-residual half of the f32 codebook (transposed)
    # q_ref:     (1, D, T)   quantized output (NCHW layout)
    # idx_ref:   (1, 1, T)   argmin indices (lane-dense)
    x_bf = x_ref[0].astype(jnp.bfloat16)                              # (D, T)
    T = x_bf.shape[1]
    ones_row = jnp.ones((1, T), jnp.bfloat16)
    x_aug = jnp.concatenate([x_bf, ones_row], axis=0)                 # (D+1, T)

    # score[k, t] = 0.5*||E_k||^2 - E_k . x_t  (single bf16 MXU matmul, f32 acc)
    score = jnp.dot(e_aug_ref[...], x_aug,
                    preferred_element_type=jnp.float32)               # (K, T)
    K = score.shape[0]

    # First-occurrence argmin over K (matches torch.min index semantics).
    # One eq-mask is reused for both the index reduction and the one-hot.
    min_val = jnp.min(score, axis=0, keepdims=True)                   # (1, T)
    iota_k = jax.lax.broadcasted_iota(jnp.int32, score.shape, 0)      # (K, T)
    cand = jnp.where(score == min_val, iota_k, K)                     # (K, T)
    idx = jnp.min(cand, axis=0, keepdims=True)                        # (1, T) int32
    # Exactly one hit even under ties (the first occurrence).
    onehot = (cand == idx).astype(jnp.bfloat16)                       # (K, T)

    # Gather codebook rows via bf16 one-hot matmuls; hi/lo split keeps the
    # selected rows ~f32-exact while using the bf16 MXU path.
    q_dt = jnp.dot(e_hi_ref[...], onehot, preferred_element_type=jnp.float32)
    q_dt = q_dt + jnp.dot(e_lo_ref[...], onehot, preferred_element_type=jnp.float32)

    q_ref[...] = q_dt[None].astype(q_ref.dtype)
    idx_ref[...] = idx[None]


def vq_pallas_nchw(x3, e_aug, e_hi, e_lo, *, tile_hw):
    """Vector-quantize x3: (B, D, HWp) against a K x D codebook.

    e_aug: (K, D+1) bf16 = [-E | 0.5*||E||^2];  e_hi/e_lo: (D, K) bf16 hi/lo split.
    Returns (quantized (B, D, HWp), indices (B, 1, HWp) int32).
    """
    B, D, HWp = x3.shape
    K, Dp1 = e_aug.shape
    assert Dp1 == D + 1
    assert HWp % tile_hw == 0 and tile_hw % 128 == 0

    est = _vmem_estimate(D, K, tile_hw)
    vmem_limit = int(min(max(2 * est, 12 << 20), 40 << 20))

    grid = (B, HWp // tile_hw)
    out_shapes = (
        jax.ShapeDtypeStruct((B, D, HWp), x3.dtype),
        jax.ShapeDtypeStruct((B, 1, HWp), jnp.int32),
    )
    q, idx = pl.pallas_call(
        _vq_kernel,
        out_shape=out_shapes,
        grid_spec=pltpu.PrefetchScalarGridSpec(
            num_scalar_prefetch=0,
            grid=grid,
            in_specs=[
                pl.BlockSpec((1, D, tile_hw), lambda b, t: (b, 0, t)),
                pl.BlockSpec((K, D + 1), lambda b, t: (0, 0)),
                pl.BlockSpec((D, K), lambda b, t: (0, 0)),
                pl.BlockSpec((D, K), lambda b, t: (0, 0)),
            ],
            out_specs=[
                pl.BlockSpec((1, D, tile_hw), lambda b, t: (b, 0, t)),
                pl.BlockSpec((1, 1, tile_hw), lambda b, t: (b, 0, t)),
            ],
        ),
        compiler_params=pltpu.CompilerParams(
            dimension_semantics=("parallel", "parallel"),
            vmem_limit_bytes=vmem_limit,
        ),
    )(x3, e_aug, e_hi, e_lo)
    return q, idx


class VectorQuantizedVAEPallas:
    """Forward-pass-equivalent of the PyTorch VectorQuantizedVAE
    (identity encoder/decoder, VQ codebook K x dim)."""

    def __init__(self, input_dim, dim, K=512, center=None, key=jax.random.PRNGKey(0)):
        self.dim = dim
        self.K = K
        # nn.Embedding(K, D).weight.data.uniform_(-1/K, 1/K)
        self.embedding = jax.random.uniform(
            key, (K, dim), dtype=jnp.float32, minval=-1.0 / K, maxval=1.0 / K
        )
        # TODO(synk): the clustered-center path (center != None) of VQEmbedding
        # is not implemented; forward() with center=None is covered.
        # TODO(synk): encoder/decoder are empty nn.Sequential() (identity).
        cb = self.embedding
        half_e2 = 0.5 * jnp.sum(cb * cb, axis=-1, keepdims=True)          # (K, 1)
        # Distance operand with the bias folded in: score = [-E|b] @ [x;1].
        self.e_aug = jnp.concatenate([-cb, half_e2], axis=1).astype(jnp.bfloat16)  # (K, D+1)
        # hi/lo bf16 split of the f32 codebook for a ~f32-exact bf16 gather.
        cb_hi = cb.astype(jnp.bfloat16)
        cb_lo = (cb - cb_hi.astype(jnp.float32)).astype(jnp.bfloat16)
        self.e_hi = cb_hi.T                                                # (D, K)
        self.e_lo = cb_lo.T                                                # (D, K)

    def forward(self, x):
        # x: (B, dim, H, W)  NCHW
        B, D, H, W = x.shape
        assert D == self.dim

        z_e_x = x  # identity encoder

        HW = H * W
        x3 = z_e_x.reshape(B, D, HW)          # contiguous reshape, free
        HWp = _round_up(HW, 128)
        if HWp != HW:
            # TODO(synk): ragged H*W could be handled in-kernel with a masked
            # final-tile store instead of this pad/slice round trip; it only
            # triggers when H*W is not a multiple of 128.
            x3 = jnp.pad(x3, ((0, 0), (0, 0), (0, HWp - HW)))

        tile = _choose_tile(HWp, B, self.K, D)
        q3, idx3 = vq_pallas_nchw(x3, self.e_aug, self.e_hi, self.e_lo, tile_hw=tile)

        if HWp != HW:
            q3 = q3[:, :, :HW]
            idx3 = idx3[:, :, :HW]

        z_q_x = q3.reshape(B, D, H, W)        # already NCHW, free reshape
        latents = idx3.reshape(B, H, W)

        self.latents = latents
        self.z_e_x = z_e_x

        z_q_x_st = z_q_x                      # same forward value (straight-through)
        x_tilde = z_q_x_st                    # identity decoder
        return x_tilde, z_e_x, z_q_x


if __name__ == "__main__":
    key = jax.random.PRNGKey(0)
    k_x, k_emb = jax.random.split(key)

    B, D, H, W = 2, 32, 16, 16     # x: (batch, dim, H, W) NCHW
    K = 512                        # module default codebook size

    model = VectorQuantizedVAEPallas(input_dim=D, dim=D, K=K, key=k_emb)
    x = jax.random.normal(k_x, (B, D, H, W), dtype=jnp.float32)

    x_tilde, z_e_x, z_q_x = model.forward(x)
    jax.block_until_ready((x_tilde, z_e_x, z_q_x))

    print("KERNEL_OK")
</pallas_src>

<mosaic_0001>
module attributes {stable_mosaic.version = 11 : i64} {
  func.func @_vq_kernel(%arg0: i32, %arg1: i32, %arg2: memref<1x32x128xf32, #tpu.memory_space<vmem>>, %arg3: memref<512x33xbf16, #tpu.memory_space<vmem>>, %arg4: memref<32x512xbf16, #tpu.memory_space<vmem>>, %arg5: memref<32x512xbf16, #tpu.memory_space<vmem>>, %arg6: memref<1x32x128xf32, #tpu.memory_space<vmem>>, %arg7: memref<1x1x128xi32, #tpu.memory_space<vmem>>) attributes {dimension_semantics = [#tpu.dimension_semantics<parallel>, #tpu.dimension_semantics<parallel>], iteration_bounds = array<i64: 2, 2>, scalar_prefetch = 0 : i64, scratch_operands = 0 : i64, tpu.core_type = #tpu.core_type<tc>, window_params = [{transform_indices = @transform_0, window_bounds = array<i64: 1, 32, 128>}, {pipeline_mode = #tpu.pipeline_mode<synchronous>, transform_indices = @transform_1, window_bounds = array<i64: 512, 33>}, {pipeline_mode = #tpu.pipeline_mode<synchronous>, transform_indices = @transform_2, window_bounds = array<i64: 32, 512>}, {pipeline_mode = #tpu.pipeline_mode<synchronous>, transform_indices = @transform_3, window_bounds = array<i64: 32, 512>}, {transform_indices = @transform_4, window_bounds = array<i64: 1, 32, 128>}, {transform_indices = @transform_5, window_bounds = array<i64: 1, 1, 128>}]} {
    %c0 = arith.constant 0 : index
    %c0_0 = arith.constant 0 : index
    %c0_1 = arith.constant 0 : index
    %0 = vector.load %arg2[%c0, %c0_0, %c0_1] : memref<1x32x128xf32, #tpu.memory_space<vmem>>, vector<1x32x128xf32>
    %1 = vector.shape_cast %0 : vector<1x32x128xf32> to vector<32x128xf32>
    %2 = arith.truncf %1 : vector<32x128xf32> to vector<32x128xbf16>
    %cst = arith.constant 1.000000e+00 : bf16
    %3 = vector.broadcast %cst : bf16 to vector<1x128xbf16>
    %4 = tpu.concatenate %2, %3 in 0 : vector<32x128xbf16>, vector<1x128xbf16> -> vector<33x128xbf16>
    %c0_2 = arith.constant 0 : index
    %c0_3 = arith.constant 0 : index
    %5 = vector.load %arg3[%c0_2, %c0_3] : memref<512x33xbf16, #tpu.memory_space<vmem>>, vector<512x33xbf16>
    %cst_4 = arith.constant dense<0.000000e+00> : vector<512x128xf32>
    %6 = tpu.matmul %5, %4, %cst_4 {dimension_numbers = #tpu.dot_dimension_numbers<[1], [0], [0], [1], [0, 0, 1, 1], [], []>} : vector<512x33xbf16>, vector<33x128xbf16>, vector<512x128xf32> -> vector<512x128xf32>
    %cst_5 = arith.constant dense<0x7F800000> : vector<128xf32>
    %7 = vector.multi_reduction <minimumf>, %6, %cst_5 [0] : vector<512x128xf32> to vector<128xf32>
    %8 = vector.shape_cast %7 : vector<128xf32> to vector<1x128xf32>
    %9 = tpu.iota {dimensions = array<i32: 0>} : vector<512x128xi32>
    %10 = vector.broadcast %8 : vector<1x128xf32> to vector<512x128xf32>
    %11 = arith.cmpf oeq, %6, %10 : vector<512x128xf32>
    %c512_i32 = arith.constant 512 : i32
    %12 = vector.broadcast %c512_i32 : i32 to vector<512x128xi32>
    %13 = arith.select %11, %9, %12 : vector<512x128xi1>, vector<512x128xi32>
    %cst_6 = arith.constant dense<2147483647> : vector<128xi32>
    %14 = vector.multi_reduction <minsi>, %13, %cst_6 [0] : vector<512x128xi32> to vector<128xi32>
    %15 = vector.shape_cast %14 : vector<128xi32> to vector<1x128xi32>
    %16 = vector.broadcast %15 : vector<1x128xi32> to vector<512x128xi32>
    %17 = arith.cmpi eq, %13, %16 : vector<512x128xi32>
    %18 = arith.extui %17 : vector<512x128xi1> to vector<512x128xi32>
    %19 = arith.sitofp %18 : vector<512x128xi32> to vector<512x128xf32>
    %20 = arith.truncf %19 : vector<512x128xf32> to vector<512x128xbf16>
    %c0_7 = arith.constant 0 : index
    %c0_8 = arith.constant 0 : index
    %21 = vector.load %arg4[%c0_7, %c0_8] : memref<32x512xbf16, #tpu.memory_space<vmem>>, vector<32x512xbf16>
    %cst_9 = arith.constant dense<0.000000e+00> : vector<32x128xf32>
    %22 = tpu.matmul %21, %20, %cst_9 {dimension_numbers = #tpu.dot_dimension_numbers<[1], [0], [0], [1], [0, 0, 1, 1], [], []>} : vector<32x512xbf16>, vector<512x128xbf16>, vector<32x128xf32> -> vector<32x128xf32>
    %c0_10 = arith.constant 0 : index
    %c0_11 = arith.constant 0 : index
    %23 = vector.load %arg5[%c0_10, %c0_11] : memref<32x512xbf16, #tpu.memory_space<vmem>>, vector<32x512xbf16>
    %cst_12 = arith.constant dense<0.000000e+00> : vector<32x128xf32>
    %24 = tpu.matmul %23, %20, %cst_12 {dimension_numbers = #tpu.dot_dimension_numbers<[1], [0], [0], [1], [0, 0, 1, 1], [], []>} : vector<32x512xbf16>, vector<512x128xbf16>, vector<32x128xf32> -> vector<32x128xf32>
    %25 = arith.addf %22, %24 : vector<32x128xf32>
    %26 = vector.shape_cast %25 : vector<32x128xf32> to vector<1x32x128xf32>
    %c0_13 = arith.constant 0 : index
    %c0_14 = arith.constant 0 : index
    %c0_15 = arith.constant 0 : index
    %27 = vector.load %arg6[%c0_13, %c0_14, %c0_15] : memref<1x32x128xf32, #tpu.memory_space<vmem>>, vector<1x32x128xf32>
    tpu.vector_store %arg6[%c0_13, %c0_14, %c0_15], %26 {strides = array<i32>} : memref<1x32x128xf32, #tpu.memory_space<vmem>>, vector<1x32x128xf32>,
    %28 = vector.shape_cast %15 : vector<1x128xi32> to vector<1x1x128xi32>
    %c0_16 = arith.constant 0 : index
    %c0_17 = arith.constant 0 : index
    %c0_18 = arith.constant 0 : index
    %29 = vector.load %arg7[%c0_16, %c0_17, %c0_18] : memref<1x1x128xi32, #tpu.memory_space<vmem>>, vector<1x1x128xi32>
    tpu.vector_store %arg7[%c0_16, %c0_17, %c0_18], %28 {strides = array<i32>} : memref<1x1x128xi32, #tpu.memory_space<vmem>>, vector<1x1x128xi32>,
    return
  }
  func.func @transform_0(%arg0: i32, %arg1: i32) -> (i32, i32, i32) {
    %c0_i32 = arith.constant 0 : i32
    %c0_i32_0 = arith.constant 0 : i32
    return %arg0, %c0_i32, %arg1 : i32, i32, i32
  }
  func.func @transform_1(%arg0: i32, %arg1: i32) -> (i32, i32) {
    %c0_i32 = arith.constant 0 : i32
    %c0_i32_0 = arith.constant 0 : i32
    %c0_i32_1 = arith.constant 0 : i32
    return %c0_i32, %c0_i32_0 : i32, i32
  }
  func.func @transform_2(%arg0: i32, %arg1: i32) -> (i32, i32) {
    %c0_i32 = arith.constant 0 : i32
    %c0_i32_0 = arith.constant 0 : i32
    %c0_i32_1 = arith.constant 0 : i32
    return %c0_i32, %c0_i32_0 : i32, i32
  }
  func.func @transform_3(%arg0: i32, %arg1: i32) -> (i32, i32) {
    %c0_i32 = arith.constant 0 : i32
    %c0_i32_0 = arith.constant 0 : i32
    %c0_i32_1 = arith.constant 0 : i32
    return %c0_i32, %c0_i32_0 : i32, i32
  }
  func.func @transform_4(%arg0: i32, %arg1: i32) -> (i32, i32, i32) {
    %c0_i32 = arith.constant 0 : i32
    %c0_i32_0 = arith.constant 0 : i32
    return %arg0, %c0_i32, %arg1 : i32, i32, i32
  }
  func.func @transform_5(%arg0: i32, %arg1: i32) -> (i32, i32, i32) {
    %c0_i32 = arith.constant 0 : i32
    %c0_i32_0 = arith.constant 0 : i32
    return %arg0, %c0_i32, %arg1 : i32, i32, i32
  }
}

</mosaic_0001>

<llo_original>
// kernel: tpu_custom_call.1
$region0: #{tpu_custom_call.1}
  #allocation0 [shape = 'u32[]', space=smem, size = 0x4, offset = 0x4, fixed_abs, tag = 'smem constant byte address 0x4 - core index']
  #allocation1 [shape = 'u32[144,128]{1,0:T(1,128)}', space=vmem, size = 0x12000, scoped, tag = 'internal scratch']
  %s0 = inlined_call_operand.vmem [shape: f32[2,32,256], index: 0, kind: input, shape index: {}]
  %s1 = inlined_call_operand.vmem [shape: bf16[512,33], index: 1, kind: input, shape index: {}]
  %s2 = inlined_call_operand.vmem [shape: bf16[32,512], index: 2, kind: input, shape index: {}]
  %s3 = inlined_call_operand.vmem [shape: bf16[32,512], index: 3, kind: input, shape index: {}]
  %s4 = inlined_call_operand.hbm [shape: f32[2,32,256], index: 4, kind: output, shape index: {0}]
  %s5 = inlined_call_operand.hbm [shape: s32[2,1,256], index: 5, kind: output, shape index: {1}]
  %6 = xla_tuple %s4, %s5
  %s7 = sld [smem:[#allocation0]]
  $region95: #{tpu_custom_call.1} parent=0
    _
  %s9 = ssub.s32 1, %s7
  %s10 = scalar_select 0, %s9, %s7
  $region1: #{tpu_custom_call.1} parent=0
    #allocation2 [shape = 'u8[32768]{0}', space=vmem, size = 0x8000, scoped, tag = 'input window, operand 0']
    #allocation3 [shape = 'u8[32768]{0}', space=vmem, size = 0x8000, scoped, tag = 'output window, operand 0']
    #allocation4 [shape = 's32[2]{0}', space=sflag, size = 0x8, scoped, tag = 'scoped memory for tpu_custom_call.1']
    #allocation5 [shape = 'u8[1024]{0}', space=vmem, size = 0x400, scoped, tag = 'output window, operand 1']
    #allocation6 [shape = 's32[2]{0}', space=sflag, size = 0x8, scoped, tag = 'scoped memory for tpu_custom_call.1']
    %11 = vsyncpa [#allocation4], 0
    %s12 = scalar_lea.sflag [#allocation4], 1
    %13 = vsyncpa %s12, 0
    %14 = vsyncpa [#allocation6], 0
    %s15 = scalar_lea.sflag [#allocation6], 1
    %16 = vsyncpa %s15, 0
    loop: start=0, step=1, limit=6
    $region2: #{tpu_custom_call.1} parent=1 // loop_pre_header
      _
    $region3: #{tpu_custom_call.1} parent=1 // loop_header
      %s18 = sphi 0, %s22
      %p19 = scmp.ge.s32.totalorder %s18, 6
      %s25 = sphi 0, %s37
      %s26 = sphi 0, %s33
      %s27 = sphi 0, %s25
      %s28 = sphi 0, %s26
      %s29 = sphi 0, %s27
      %s30 = sphi 0, %s28
      %s42 = sphi 0, %s44
      %s45 = sphi 0, %s42
      %s46 = sphi 0, %s45
      %s62 = sphi 0, %s46
      %s66 = sphi 0, %s66
      %s68 = sphi 0, %s66
      %s69 = sphi 0, %s68
      %s83 = sphi 0, %s69
      %s87 = sphi 0, %s87
      %s89 = sphi 0, %s87
      %s90 = sphi 0, %s89
      %s104 = sphi 0, %s90
      %s108 = sphi 0, %s108
      %s110 = sphi 0, %s108
      %s111 = sphi 0, %s110
      %s125 = sphi 0, %s111
      %s133 = sphi 0, %s135
      %s136 = sphi 0, %s133
      %s137 = sphi 0, %s136
      %s153 = sphi 0, %s137
      %s161 = sphi 0, %s163
      %s164 = sphi 0, %s161
      %s165 = sphi 0, %s164
      %s181 = sphi 0, %s165
    $region4: #{tpu_custom_call.1} parent=1 // loop_header_branch
      %21 = sbr.rel (%p19) target = $region8
    $region5: #{tpu_custom_call.1} parent=1 // loop_body
      %s23 = ssub.s32 %s18, 1
      %s24 = ssub.s32 %s18, 2
      %s31 = sadd.s32 1, %s26
      %p32 = scmp.ge.s32.totalorder %s31, 2
      %s33 = scalar_select %p32, 0, %s31
      %s34 = sadd.s32 1, %s25
      %s35 = scalar_select %p32, %s34, %s25
      %p36 = scmp.ge.s32.totalorder %s35, 2
      %s37 = scalar_select %p36, 0, %s35
      %s38 = ssub.s32 %s25, %s37
      %s39 = ssub.s32 %s26, %s33
      %s40 = sor.u32 %s38, %s39
      %p41 = scmp.eq.s32.totalorder %s40, 0
      %s43 = sadd.s32 %s42, 1
      %s44 = scalar_select %p41, %s42, %s43
      %p47 = pneg %p41
      %p48 = scmp.eq.s32.totalorder %s18, 3
      %p49 = por %p47, %p48
      %p50 = scmp.ne.s32.totalorder %s42, %s45
      %p51 = scmp.eq.s32.totalorder %s18, 0
      %p52 = por %p50, %p51
      %p53 = scmp.ne.s32.totalorder %s42, %s45
      %p54 = scmp.eq.s32.totalorder %s23, 3
      %p55 = por %p53, %p54
      %p56 = scmp.ne.s32.totalorder %s45, %s46
      %p57 = scmp.eq.s32.totalorder %s23, 0
      %p58 = por %p56, %p57
      %p59 = scmp.ne.s32.totalorder %s45, %s46
      %p60 = scmp.eq.s32.totalorder %s24, 3
      %p61 = por %p59, %p60
      %p63 = scmp.ne.s32.totalorder %s46, %s62
      %p64 = scmp.eq.s32.totalorder %s24, 0
      %p65 = por %p63, %p64
      %s67 = sadd.s32 %s66, 1
      %p70 = scmp.eq.s32.totalorder %s18, 3
      %p71 = scmp.ne.s32.totalorder %s66, %s68
      %p72 = scmp.eq.s32.totalorder %s18, 0
      %p73 = por %p71, %p72
      %p74 = scmp.ne.s32.totalorder %s66, %s68
      %p75 = scmp.eq.s32.totalorder %s23, 3
      %p76 = por %p74, %p75
      %p77 = scmp.ne.s32.totalorder %s68, %s69
      %p78 = scmp.eq.s32.totalorder %s23, 0
      %p79 = por %p77, %p78
      %p80 = scmp.ne.s32.totalorder %s68, %s69
      %p81 = scmp.eq.s32.totalorder %s24, 3
      %p82 = por %p80, %p81
      %p84 = scmp.ne.s32.totalorder %s69, %s83
      %p85 = scmp.eq.s32.totalorder %s24, 0
      %p86 = por %p84, %p85
      %s88 = sadd.s32 %s87, 1
      %p91 = scmp.eq.s32.totalorder %s18, 3
      %p92 = scmp.ne.s32.totalorder %s87, %s89
      %p93 = scmp.eq.s32.totalorder %s18, 0
      %p94 = por %p92, %p93
      %p95 = scmp.ne.s32.totalorder %s87, %s89
      %p96 = scmp.eq.s32.totalorder %s23, 3
      %p97 = por %p95, %p96
      %p98 = scmp.ne.s32.totalorder %s89, %s90
      %p99 = scmp.eq.s32.totalorder %s23, 0
      %p100 = por %p98, %p99
      %p101 = scmp.ne.s32.totalorder %s89, %s90
      %p102 = scmp.eq.s32.totalorder %s24, 3
      %p103 = por %p101, %p102
      %p105 = scmp.ne.s32.totalorder %s90, %s104
      %p106 = scmp.eq.s32.totalorder %s24, 0
      %p107 = por %p105, %p106
      %s109 = sadd.s32 %s108, 1
      %p112 = scmp.eq.s32.totalorder %s18, 3
      %p113 = scmp.ne.s32.totalorder %s108, %s110
      %p114 = scmp.eq.s32.totalorder %s18, 0
      %p115 = por %p113, %p114
      %p116 = scmp.ne.s32.totalorder %s108, %s110
      %p117 = scmp.eq.s32.totalorder %s23, 3
      %p118 = por %p116, %p117
      %p119 = scmp.ne.s32.totalorder %s110, %s111
      %p120 = scmp.eq.s32.totalorder %s23, 0
      %p121 = por %p119, %p120
      %p122 = scmp.ne.s32.totalorder %s110, %s111
      %p123 = scmp.eq.s32.totalorder %s24, 3
      %p124 = por %p122, %p123
      %p126 = scmp.ne.s32.totalorder %s111, %s125
      %p127 = scmp.eq.s32.totalorder %s24, 0
      %p128 = por %p126, %p127
      %s129 = ssub.s32 %s25, %s37
      %s130 = ssub.s32 %s26, %s33
      %s131 = sor.u32 %s129, %s130
      %p132 = scmp.eq.s32.totalorder %s131, 0
      %s134 = sadd.s32 %s133, 1
      %s135 = scalar_select %p132, %s133, %s134
      %p138 = pneg %p132
      %p139 = scmp.eq.s32.totalorder %s18, 3
      %p140 = por %p138, %p139
      %p141 = scmp.ne.s32.totalorder %s133, %s136
      %p142 = scmp.eq.s32.totalorder %s18, 0
      %p143 = por %p141, %p142
      %p144 = scmp.ne.s32.totalorder %s133, %s136
      %p145 = scmp.eq.s32.totalorder %s23, 3
      %p146 = por %p144, %p145
      %p147 = scmp.ne.s32.totalorder %s136, %s137
      %p148 = scmp.eq.s32.totalorder %s23, 0
      %p149 = por %p147, %p148
      %p150 = scmp.ne.s32.totalorder %s136, %s137
      %p151 = scmp.eq.s32.totalorder %s24, 3
      %p152 = por %p150, %p151
      %p154 = scmp.ne.s32.totalorder %s137, %s153
      %p155 = scmp.eq.s32.totalorder %s24, 0
      %p156 = por %p154, %p155
      %s157 = ssub.s32 %s25, %s37
      %s158 = ssub.s32 %s26, %s33
      %s159 = sor.u32 %s157, %s158
      %p160 = scmp.eq.s32.totalorder %s159, 0
      %s162 = sadd.s32 %s161, 1
      %s163 = scalar_select %p160, %s161, %s162
      %p166 = pneg %p160
      %p167 = scmp.eq.s32.totalorder %s18, 3
      %p168 = por %p166, %p167
      %p169 = scmp.ne.s32.totalorder %s161, %s164
      %p170 = scmp.eq.s32.totalorder %s18, 0
      %p171 = por %p169, %p170
      %p172 = scmp.ne.s32.totalorder %s161, %s164
      %p173 = scmp.eq.s32.totalorder %s23, 3
      %p174 = por %p172, %p173
      %p175 = scmp.ne.s32.totalorder %s164, %s165
      %p176 = scmp.eq.s32.totalorder %s23, 0
      %p177 = por %p175, %p176
      %p178 = scmp.ne.s32.totalorder %s164, %s165
      %p179 = scmp.eq.s32.totalorder %s24, 3
      %p180 = por %p178, %p179
      %p182 = scmp.ne.s32.totalorder %s165, %s181
      %p183 = scmp.eq.s32.totalorder %s24, 0
      %p184 = por %p182, %p183
      %p185 = scmp.le.s32.totalorder 1, %s18
      %p186 = scmp.lt.s32.totalorder %s18, 5
      %p187 = pnand %p185, %p186
      %p188 = pneg %p187
      // Predicated region
      $region9: #{tpu_custom_call.1} parent=5 // pred_check
        _
      $region10: #{tpu_custom_call.1} parent=5 // pred_check_branch
        %190 = sbr.rel (%p187) target = $region12
      $region11: #{tpu_custom_call.1} parent=5 // pred_region
        %s191 = ssub.s32 %s18, 1
        // Predicated region
        $region13: #{tpu_custom_call.1} parent=11 // pred_check
          %p192 = pneg %p79
        $region14: #{tpu_custom_call.1} parent=11 // pred_check_branch
          %194 = sbr.rel (%p192) target = $region16
        $region15: #{tpu_custom_call.1} parent=11 // pred_region
          _
        $region16: #{tpu_custom_call.1} parent=11 // pred_fallthru
          _
        // Predicated region
        $region17: #{tpu_custom_call.1} parent=11 // pred_check
          %p195 = pneg %p100
        $region18: #{tpu_custom_call.1} parent=11 // pred_check_branch
          %197 = sbr.rel (%p195) target = $region20
        $region19: #{tpu_custom_call.1} parent=11 // pred_region
          _
        $region20: #{tpu_custom_call.1} parent=11 // pred_fallthru
          _
        // Predicated region
        $region21: #{tpu_custom_call.1} parent=11 // pred_check
          %p198 = pneg %p121
        $region22: #{tpu_custom_call.1} parent=11 // pred_check_branch
          %200 = sbr.rel (%p198) target = $region24
        $region23: #{tpu_custom_call.1} parent=11 // pred_region
          _
        $region24: #{tpu_custom_call.1} parent=11 // pred_fallthru
          _
      $region12: #{tpu_custom_call.1} parent=5 // pred_fallthru
        _
      %p201 = scmp.lt.s32.totalorder %s18, 4
      // Predicated region
      $region25: #{tpu_custom_call.1} parent=5 // pred_check
        %p202 = pneg %p201
      $region26: #{tpu_custom_call.1} parent=5 // pred_check_branch
        %204 = sbr.rel (%p202) target = $region28
      $region27: #{tpu_custom_call.1} parent=5 // pred_region
        // Predicated region
        $region29: #{tpu_custom_call.1} parent=27 // pred_check
          %p205 = pneg %p52
        $region30: #{tpu_custom_call.1} parent=27 // pred_check_branch
          %207 = sbr.rel (%p205) target = $region32
        $region31: #{tpu_custom_call.1} parent=27 // pred_region
          %s208 = sand.u32 %s42, 1
          %s209 = sand.u32 %s42, 1
          %s210 = smul.addr %s209, 32
          %s211 = scalar_lea.vmem [#allocation2], %s210
          %s212 = smul.addr %s25, 8
          %s213 = sadd.s32 %s26, %s212
          %s214 = smul.addr %s213, 8
          %s215 = scalar_lea.vmem %s0, %s214
          // Predicated region
          $region33: #{tpu_custom_call.1} parent=31 // pred_check
            _
          $region34: #{tpu_custom_call.1} parent=31 // pred_check_branch
            %217 = sbr.rel (0) target = $region36
          $region35: #{tpu_custom_call.1} parent=31 // pred_region
            // Predicated region
            $region37: #{tpu_custom_call.1} parent=35 // pred_check
              _
            $region38: #{tpu_custom_call.1} parent=35 // pred_check_branch
              %219 = sbr.rel (0) target = $region40
            $region39: #{tpu_custom_call.1} parent=35 // pred_region
              // Predicated region
              $region52: #{tpu_custom_call.1} parent=39 // pred_check
                _
              $region53: #{tpu_custom_call.1} parent=39 // pred_check_branch
                %241 = sbr.rel (0) target = $region55
              $region54: #{tpu_custom_call.1} parent=39 // pred_region
                loop: start=0, step=1, limit=1
                $region56: #{tpu_custom_call.1} parent=54 // loop_pre_header
                  _
                $region57: #{tpu_custom_call.1} parent=54 // loop_header
                  %s243 = sphi 0, %s247
                  %p244 = scmp.ge.s32.totalorder %s243, 1
                  %s248 = sphi %s215, %s215
                  %s249 = sphi %s211, %s211
                $region58: #{tpu_custom_call.1} parent=54 // loop_header_branch
                  %246 = sbr.rel (%p244) target = $region62
                $region59: #{tpu_custom_call.1} parent=54 // loop_body
                  %v250 = vld [vmem:[%s248] sm:$0xff]
                  %251 = vst [vmem:[%s249] sm:$0xff] %v250
                  %v252 = vld [vmem:[%s248 + $0x10] sm:$0xff]
                  %253 = vst [vmem:[%s249 + $0x8] sm:$0xff] %v252
                  %v254 = vld [vmem:[%s248 + $0x20] sm:$0xff]
                  %255 = vst [vmem:[%s249 + $0x10] sm:$0xff] %v254
                  %v256 = vld [vmem:[%s248 + $0x30] sm:$0xff]
                  %257 = vst [vmem:[%s249 + $0x18] sm:$0xff] %v256
                $region60: #{tpu_custom_call.1} parent=54 // loop_footer
                  %s247 = sadd.s32 1, %s243
                $region61: #{tpu_custom_call.1} parent=54 // loop_footer_branch
                  %242 = sbr.rel target = $region57
                $region62: #{tpu_custom_call.1} parent=54 // loop_exit
                  _
              $region55: #{tpu_custom_call.1} parent=39 // pred_fallthru
                _
              // Predicated region
              $region63: #{tpu_custom_call.1} parent=39 // pred_check
                _
              $region64: #{tpu_custom_call.1} parent=39 // pred_check_branch
                %259 = sbr.rel target = $region66
              $region65: #{tpu_custom_call.1} parent=39 // pred_region
                _
              $region66: #{tpu_custom_call.1} parent=39 // pred_fallthru
                _
            $region40: #{tpu_custom_call.1} parent=35 // pred_fallthru
              _
            // Predicated region
            $region41: #{tpu_custom_call.1} parent=35 // pred_check
              _
            $region42: #{tpu_custom_call.1} parent=35 // pred_check_branch
              %221 = sbr.rel target = $region44
            $region43: #{tpu_custom_call.1} parent=35 // pred_region
              %s223 = ssub.s32 256, 1
              loop: start=0, step=1, limit=1
              $region45: #{tpu_custom_call.1} parent=43 // loop_pre_header
                _
              $region46: #{tpu_custom_call.1} parent=43 // loop_header
                %s225 = sphi 0, %s229
                %p226 = scmp.ge.s32.totalorder %s225, 1
                %s230 = sphi %s215, %s215
                %s231 = sphi %s211, %s211
              $region47: #{tpu_custom_call.1} parent=43 // loop_header_branch
                %228 = sbr.rel (%p226) target = $region51
              $region48: #{tpu_custom_call.1} parent=43 // loop_body
                %v232 = vld [vmem:[%s230] sm:%s223]
                %233 = vst [vmem:[%s231] sm:%s223] %v232
                %v234 = vld [vmem:[%s230 + $0x10] sm:%s223]
                %235 = vst [vmem:[%s231 + $0x8] sm:%s223] %v234
                %v236 = vld [vmem:[%s230 + $0x20] sm:%s223]
                %237 = vst [vmem:[%s231 + $0x10] sm:%s223] %v236
                %v238 = vld [vmem:[%s230 + $0x30] sm:%s223]
                %239 = vst [vmem:[%s231 + $0x18] sm:%s223] %v238
              $region49: #{tpu_custom_call.1} parent=43 // loop_footer
                %s229 = sadd.s32 1, %s225
              $region50: #{tpu_custom_call.1} parent=43 // loop_footer_branch
                %224 = sbr.rel target = $region46
              $region51: #{tpu_custom_call.1} parent=43 // loop_exit
                _
            $region44: #{tpu_custom_call.1} parent=35 // pred_fallthru
              _
          $region36: #{tpu_custom_call.1} parent=31 // pred_fallthru
            _
          %260 = vnop
        $region32: #{tpu_custom_call.1} parent=27 // pred_fallthru
          _
      $region28: #{tpu_custom_call.1} parent=5 // pred_fallthru
        _
      %p261 = scmp.le.s32.totalorder 1, %s18
      %p262 = scmp.lt.s32.totalorder %s18, 5
      %p263 = pnand %p261, %p262
      %p264 = pneg %p263
      // Predicated region
      $region67: #{tpu_custom_call.1} parent=5 // pred_check
        _
      $region68: #{tpu_custom_call.1} parent=5 // pred_check_branch
        %266 = sbr.rel (%p263) target = $region70
      $region69: #{tpu_custom_call.1} parent=5 // pred_region
        %s267 = ssub.s32 %s18, 1
        %s268 = sand.u32 %s45, 1
        %s269 = sand.u32 %s45, 1
        %s270 = smul.addr %s269, 32
        %s271 = scalar_lea.vmem [#allocation2], %s270
        // Predicated region
        $region71: #{tpu_custom_call.1} parent=69 // pred_check
          %p272 = pneg %p58
        $region72: #{tpu_custom_call.1} parent=69 // pred_check_branch
          %274 = sbr.rel (%p272) target = $region74
        $region73: #{tpu_custom_call.1} parent=69 // pred_region
          _
        $region74: #{tpu_custom_call.1} parent=69 // pred_fallthru
          _
        %s275 = sand.u32 %s45, 1
        %s276 = sand.u32 %s45, 1
        %s277 = smul.addr %s276, 32
        %s278 = scalar_lea.vmem [#allocation2], %s277
        %p279 = pneg %p58
        %p280 = pneg %p55
        %p281 = pneg %p79
        %p282 = pneg %p76
        %p283 = pneg %p100
        %p284 = pneg %p97
        %p285 = pneg %p121
        %p286 = pneg %p118
        %p287 = pneg %p149
        %p288 = pneg %p146
        %s289 = sand.u32 %s136, 1
        %s290 = scalar_lea.sflag [#allocation4], %s289
        %s291 = sand.u32 %s136, 1
        %s292 = smul.addr %s291, 32
        %s293 = scalar_lea.vmem [#allocation3], %s292
        %p294 = pneg %p177
        %p295 = pneg %p174
        %s296 = sand.u32 %s164, 1
        %s297 = scalar_lea.sflag [#allocation6], %s296
        %s298 = sand.u32 %s164, 1
        %s299 = scalar_lea.vmem [#allocation5], %s298
        %v302 = vld [vmem:[%s271] sm:$0xff]
        %v303 = vld [vmem:[%s271 + $0x8] sm:$0xff]
        %v304 = vld [vmem:[%s271 + $0x10] sm:$0xff]
        %v305 = vld [vmem:[%s271 + $0x18] sm:$0xff]
        %v306 = vpack.c.bf16 %v303, %v302
        %v307 = vpack.c.bf16 %v305, %v304
        %v308 = vld [vmem:[%s1] sm:$0xf]
        %v309 = vld [vmem:[%s1 + $0x4] sm:$0xf]
        %v310 = vld [vmem:[%s1 + $0x8] sm:$0xf]
        %v311 = vld [vmem:[%s1 + $0xc] sm:$0xf]
        %v312 = vld [vmem:[%s1 + $0x10] sm:$0xf]
        %v313 = vld [vmem:[%s1 + $0x14] sm:$0xf]
        %v314 = vld [vmem:[%s1 + $0x18] sm:$0xf]
        %v315 = vld [vmem:[%s1 + $0x1c] sm:$0xf]
        %v316 = vld [vmem:[%s1 + $0x20] sm:$0xf]
        %v317 = vld [vmem:[%s1 + $0x24] sm:$0xf]
        %v318 = vld [vmem:[%s1 + $0x28] sm:$0xf]
        %v319 = vld [vmem:[%s1 + $0x2c] sm:$0xf]
        %v320 = vld [vmem:[%s1 + $0x30] sm:$0xf]
        %v321 = vld [vmem:[%s1 + $0x34] sm:$0xf]
        %v322 = vld [vmem:[%s1 + $0x38] sm:$0xf]
        %v323 = vld [vmem:[%s1 + $0x3c] sm:$0xf]
        %v324 = vld [vmem:[%s1 + $0x40] sm:$0xf]
        %v325 = vld [vmem:[%s1 + $0x44] sm:$0xf]
        %v326 = vld [vmem:[%s1 + $0x48] sm:$0xf]
        %v327 = vld [vmem:[%s1 + $0x4c] sm:$0xf]
        %v328 = vld [vmem:[%s1 + $0x50] sm:$0xf]
        %v329 = vld [vmem:[%s1 + $0x54] sm:$0xf]
        %v330 = vld [vmem:[%s1 + $0x58] sm:$0xf]
        %v331 = vld [vmem:[%s1 + $0x5c] sm:$0xf]
        %v332 = vld [vmem:[%s1 + $0x60] sm:$0xf]
        %v333 = vld [vmem:[%s1 + $0x64] sm:$0xf]
        %v334 = vld [vmem:[%s1 + $0x68] sm:$0xf]
        %v335 = vld [vmem:[%s1 + $0x6c] sm:$0xf]
        %v336 = vld [vmem:[%s1 + $0x70] sm:$0xf]
        %v337 = vld [vmem:[%s1 + $0x74] sm:$0xf]
        %v338 = vld [vmem:[%s1 + $0x78] sm:$0xf]
        %v339 = vld [vmem:[%s1 + $0x7c] sm:$0xf]
        %v340 = vld [vmem:[%s1 + $0x80] sm:$0xf]
        %v341 = vld [vmem:[%s1 + $0x84] sm:$0xf]
        %v342 = vld [vmem:[%s1 + $0x88] sm:$0xf]
        %v343 = vld [vmem:[%s1 + $0x8c] sm:$0xf]
        %v344 = vld [vmem:[%s1 + $0x90] sm:$0xf]
        %v345 = vld [vmem:[%s1 + $0x94] sm:$0xf]
        %v346 = vld [vmem:[%s1 + $0x98] sm:$0xf]
        %v347 = vld [vmem:[%s1 + $0x9c] sm:$0xf]
        %v348 = vld [vmem:[%s1 + $0xa0] sm:$0xf]
        %v349 = vld [vmem:[%s1 + $0xa4] sm:$0xf]
        %v350 = vld [vmem:[%s1 + $0xa8] sm:$0xf]
        %v351 = vld [vmem:[%s1 + $0xac] sm:$0xf]
        %v352 = vld [vmem:[%s1 + $0xb0] sm:$0xf]
        %v353 = vld [vmem:[%s1 + $0xb4] sm:$0xf]
        %v354 = vld [vmem:[%s1 + $0xb8] sm:$0xf]
        %v355 = vld [vmem:[%s1 + $0xbc] sm:$0xf]
        %v356 = vld [vmem:[%s1 + $0xc0] sm:$0xf]
        %v357 = vld [vmem:[%s1 + $0xc4] sm:$0xf]
        %v358 = vld [vmem:[%s1 + $0xc8] sm:$0xf]
        %v359 = vld [vmem:[%s1 + $0xcc] sm:$0xf]
        %v360 = vld [vmem:[%s1 + $0xd0] sm:$0xf]
        %v361 = vld [vmem:[%s1 + $0xd4] sm:$0xf]
        %v362 = vld [vmem:[%s1 + $0xd8] sm:$0xf]
        %v363 = vld [vmem:[%s1 + $0xdc] sm:$0xf]
        %v364 = vld [vmem:[%s1 + $0xe0] sm:$0xf]
        %v365 = vld [vmem:[%s1 + $0xe4] sm:$0xf]
        %v366 = vld [vmem:[%s1 + $0xe8] sm:$0xf]
        %v367 = vld [vmem:[%s1 + $0xec] sm:$0xf]
        %v368 = vld [vmem:[%s1 + $0xf0] sm:$0xf]
        %v369 = vld [vmem:[%s1 + $0xf4] sm:$0xf]
        %v370 = vld [vmem:[%s1 + $0xf8] sm:$0xf]
        %v371 = vld [vmem:[%s1 + $0xfc] sm:$0xf]
        %v436 = vunpack.c.l.b16 %v308
        %v437 = vunpack.c.l.b16 %v309
        %v438 = vunpack.c.l.b16 %v310
        %v439 = vunpack.c.l.b16 %v311
        %v440 = vunpack.c.l.b16 %v312
        %v441 = vunpack.c.l.b16 %v313
        %v442 = vunpack.c.l.b16 %v314
        %v443 = vunpack.c.l.b16 %v315
        %v444 = vunpack.c.l.b16 %v316
        %v445 = vunpack.c.l.b16 %v317
        %v446 = vunpack.c.l.b16 %v318
        %v447 = vunpack.c.l.b16 %v319
        %v448 = vunpack.c.l.b16 %v320
        %v449 = vunpack.c.l.b16 %v321
        %v450 = vunpack.c.l.b16 %v322
        %v451 = vunpack.c.l.b16 %v323
        %v452 = vunpack.c.l.b16 %v324
        %v453 = vunpack.c.l.b16 %v325
        %v454 = vunpack.c.l.b16 %v326
        %v455 = vunpack.c.l.b16 %v327
        %v456 = vunpack.c.l.b16 %v328
        %v457 = vunpack.c.l.b16 %v329
        %v458 = vunpack.c.l.b16 %v330
        %v459 = vunpack.c.l.b16 %v331
        %v460 = vunpack.c.l.b16 %v332
        %v461 = vunpack.c.l.b16 %v333
        %v462 = vunpack.c.l.b16 %v334
        %v463 = vunpack.c.l.b16 %v335
        %v464 = vunpack.c.l.b16 %v336
        %v465 = vunpack.c.l.b16 %v337
        %v466 = vunpack.c.l.b16 %v338
        %v467 = vunpack.c.l.b16 %v339
        %v468 = vunpack.c.l.b16 %v340
        %v469 = vunpack.c.l.b16 %v341
        %v470 = vunpack.c.l.b16 %v342
        %v471 = vunpack.c.l.b16 %v343
        %v472 = vunpack.c.l.b16 %v344
        %v473 = vunpack.c.l.b16 %v345
        %v474 = vunpack.c.l.b16 %v346
        %v475 = vunpack.c.l.b16 %v347
        %v476 = vunpack.c.l.b16 %v348
        %v477 = vunpack.c.l.b16 %v349
        %v478 = vunpack.c.l.b16 %v350
        %v479 = vunpack.c.l.b16 %v351
        %v480 = vunpack.c.l.b16 %v352
        %v481 = vunpack.c.l.b16 %v353
        %v482 = vunpack.c.l.b16 %v354
        %v483 = vunpack.c.l.b16 %v355
        %v484 = vunpack.c.l.b16 %v356
        %v485 = vunpack.c.l.b16 %v357
        %v486 = vunpack.c.l.b16 %v358
        %v487 = vunpack.c.l.b16 %v359
        %v488 = vunpack.c.l.b16 %v360
        %v489 = vunpack.c.l.b16 %v361
        %v490 = vunpack.c.l.b16 %v362
        %v491 = vunpack.c.l.b16 %v363
        %v492 = vunpack.c.l.b16 %v364
        %v493 = vunpack.c.l.b16 %v365
        %v494 = vunpack.c.l.b16 %v366
        %v495 = vunpack.c.l.b16 %v367
        %v496 = vunpack.c.l.b16 %v368
        %v497 = vunpack.c.l.b16 %v369
        %v498 = vunpack.c.l.b16 %v370
        %v499 = vunpack.c.l.b16 %v371
        %v500 = vpack.c.b16 %v437, %v436
        %v501 = vpack.c.b16 %v439, %v438
        %v502 = vpack.c.b16 %v441, %v440
        %v503 = vpack.c.b16 %v443, %v442
        %v504 = vpack.c.b16 %v445, %v444
        %v505 = vpack.c.b16 %v447, %v446
        %v506 = vpack.c.b16 %v449, %v448
        %v507 = vpack.c.b16 %v451, %v450
        %v508 = vpack.c.b16 %v453, %v452
        %v509 = vpack.c.b16 %v455, %v454
        %v510 = vpack.c.b16 %v457, %v456
        %v511 = vpack.c.b16 %v459, %v458
        %v512 = vpack.c.b16 %v461, %v460
        %v513 = vpack.c.b16 %v463, %v462
        %v514 = vpack.c.b16 %v465, %v464
        %v515 = vpack.c.b16 %v467, %v466
        %v516 = vpack.c.b16 %v469, %v468
        %v517 = vpack.c.b16 %v471, %v470
        %v518 = vpack.c.b16 %v473, %v472
        %v519 = vpack.c.b16 %v475, %v474
        %v520 = vpack.c.b16 %v477, %v476
        %v521 = vpack.c.b16 %v479, %v478
        %v522 = vpack.c.b16 %v481, %v480
        %v523 = vpack.c.b16 %v483, %v482
        %v524 = vpack.c.b16 %v485, %v484
        %v525 = vpack.c.b16 %v487, %v486
        %v526 = vpack.c.b16 %v489, %v488
        %v527 = vpack.c.b16 %v491, %v490
        %v528 = vpack.c.b16 %v493, %v492
        %v529 = vpack.c.b16 %v495, %v494
        %v530 = vpack.c.b16 %v497, %v496
        %v531 = vpack.c.b16 %v499, %v498
        %vm532 = vcmask 269312
        %v534 = vsel %vm532, %v500, 0
        %v537 = vsel %vm532, %v501, 0
        %v540 = vsel %vm532, %v502, 0
        %v543 = vsel %vm532, %v503, 0
        %v546 = vsel %vm532, %v504, 0
        %v549 = vsel %vm532, %v505, 0
        %v552 = vsel %vm532, %v506, 0
        %v555 = vsel %vm532, %v507, 0
        %v558 = vsel %vm532, %v508, 0
        %v561 = vsel %vm532, %v509, 0
        %v564 = vsel %vm532, %v510, 0
        %v567 = vsel %vm532, %v511, 0
        %v570 = vsel %vm532, %v512, 0
        %v573 = vsel %vm532, %v513, 0
        %v576 = vsel %vm532, %v514, 0
        %v579 = vsel %vm532, %v515, 0
        %v582 = vsel %vm532, %v516, 0
        %v585 = vsel %vm532, %v517, 0
        %v588 = vsel %vm532, %v518, 0
        %v591 = vsel %vm532, %v519, 0
        %v594 = vsel %vm532, %v520, 0
        %v597 = vsel %vm532, %v521, 0
        %v600 = vsel %vm532, %v522, 0
        %v603 = vsel %vm532, %v523, 0
        %v606 = vsel %vm532, %v524, 0
        %v609 = vsel %vm532, %v525, 0
        %v612 = vsel %vm532, %v526, 0
        %v615 = vsel %vm532, %v527, 0
        %v618 = vsel %vm532, %v528, 0
        %v621 = vsel %vm532, %v529, 0
        %v624 = vsel %vm532, %v530, 0
        %v627 = vsel %vm532, %v531, 0
        %vm629 = vcmask 1040384
        %v630 = vsel 0, 4294967295, 65535
        %v631 = vsel %vm629, %v630, 0
        %v633 = vand.u32 1065369472, %v631
        %635 = vmatprep.subr.bf16.mxu0 0
        %636 = vmatpush1.bf16.msra.mxu0 0
        %637 = vmatprep.subr.bf16.mxu0 0
        %638 = vmatpush1.bf16.msra.mxu0 0
        %639 = vmatprep.subr.bf16.mxu0 0
        %640 = vmatpush1.bf16.msra.mxu0 0
        %641 = vmatprep.subr.bf16.mxu0 0
        %642 = vmatpush1.bf16.msra.mxu0 0
        %643 = vmatprep.subr.bf16.mxu0 0
        %644 = vmatpush1.bf16.msra.mxu0 0
        %645 = vmatprep.subr.bf16.mxu0 0
        %646 = vmatpush1.bf16.msra.mxu0 %v633
        %647 = vmatprep.subr.bf16.mxu0 0
        %648 = vmatpush1.bf16.msra.mxu0 %v307
        %649 = vmatprep.subr.bf16.mxu0 0
        %650 = vmatpush1.bf16.msra.mxu0 %v306
        %651 = vmatprep.subr.bf16.mxu0 0
        %652 = vmatpush2.bf16.msra.mxu0 0
        %653 = vmatprep.subr.bf16.mxu0 0
        %654 = vmatpush2.bf16.msra.mxu0 0
        %655 = vmatprep.subr.bf16.mxu0 0
        %656 = vmatpush2.bf16.msra.mxu0 0
        %657 = vmatprep.subr.bf16.mxu0 0
        %658 = vmatpush2.bf16.msra.mxu0 0
        %659 = vmatprep.subr.bf16.mxu0 0
        %660 = vmatpush2.bf16.msra.mxu0 0
        %661 = vmatprep.subr.bf16.mxu0 0
        %662 = vmatpush2.bf16.msra.mxu0 0
        %663 = vmatprep.subr.bf16.mxu0 0
        %664 = vmatpush2.bf16.msra.mxu0 0
        %665 = vmatprep.subr.bf16.mxu0 0
        %666 = vmatpush2.bf16.msra.mxu0 0
        %667 = vmatprep.mubr.bf16.mxu0 0
        %668 = vmatmul.mubr.bf16.gmra.mxu0 %v534
        %v669 = vpop.f32.mrf.mxu0
        %v670 = vadd.f32 0.0, %v669
        %v671 = vpop.f32.mrf.mxu0
        %v672 = vpop.f32.mrf.mxu0
        %v673 = vadd.f32 0.0, %v672
        %v674 = vpop.f32.mrf.mxu0
        %675 = vmatprep.mubr.bf16.mxu0 0
        %676 = vmatmul.mubr.bf16.gmra.mxu0 %v537
        %v677 = vpop.f32.mrf.mxu0
        %v678 = vadd.f32 0.0, %v677
        %v679 = vpop.f32.mrf.mxu0
        %v680 = vpop.f32.mrf.mxu0
        %v681 = vadd.f32 0.0, %v680
        %v682 = vpop.f32.mrf.mxu0
        %683 = vmatprep.mubr.bf16.mxu0 0
        %684 = vmatmul.mubr.bf16.gmra.mxu0 %v540
        %v685 = vpop.f32.mrf.mxu0
        %v686 = vadd.f32 0.0, %v685
        %v687 = vpop.f32.mrf.mxu0
        %v688 = vpop.f32.mrf.mxu0
        %v689 = vadd.f32 0.0, %v688
        %v690 = vpop.f32.mrf.mxu0
        %691 = vmatprep.mubr.bf16.mxu0 0
        %692 = vmatmul.mubr.bf16.gmra.mxu0 %v543
        %v693 = vpop.f32.mrf.mxu0
        %v694 = vadd.f32 0.0, %v693
        %v695 = vpop.f32.mrf.mxu0
        %v696 = vpop.f32.mrf.mxu0
        %v697 = vadd.f32 0.0, %v696
        %v698 = vpop.f32.mrf.mxu0
        %699 = vmatprep.mubr.bf16.mxu0 0
        %700 = vmatmul.mubr.bf16.gmra.mxu0 %v546
        %v701 = vpop.f32.mrf.mxu0
        %v702 = vadd.f32 0.0, %v701
        %v703 = vpop.f32.mrf.mxu0
        %v704 = vpop.f32.mrf.mxu0
        %v705 = vadd.f32 0.0, %v704
        %v706 = vpop.f32.mrf.mxu0
        %707 = vmatprep.mubr.bf16.mxu0 0
        %708 = vmatmul.mubr.bf16.gmra.mxu0 %v549
        %v709 = vpop.f32.mrf.mxu0
        %v710 = vadd.f32 0.0, %v709
        %v711 = vpop.f32.mrf.mxu0
        %v712 = vpop.f32.mrf.mxu0
        %v713 = vadd.f32 0.0, %v712
        %v714 = vpop.f32.mrf.mxu0
        %715 = vmatprep.mubr.bf16.mxu0 0
        %716 = vmatmul.mubr.bf16.gmra.mxu0 %v552
        %v717 = vpop.f32.mrf.mxu0
        %v718 = vadd.f32 0.0, %v717
        %v719 = vpop.f32.mrf.mxu0
        %v720 = vpop.f32.mrf.mxu0
        %v721 = vadd.f32 0.0, %v720
        %v722 = vpop.f32.mrf.mxu0
        %723 = vmatprep.mubr.bf16.mxu0 0
        %724 = vmatmul.mubr.bf16.gmra.mxu0 %v555
        %v725 = vpop.f32.mrf.mxu0
        %v726 = vadd.f32 0.0, %v725
        %v727 = vpop.f32.mrf.mxu0
        %v728 = vpop.f32.mrf.mxu0
        %v729 = vadd.f32 0.0, %v728
        %v730 = vpop.f32.mrf.mxu0
        %731 = vmatprep.mubr.bf16.mxu0 0
        %732 = vmatmul.mubr.bf16.gmra.mxu0 %v558
        %v733 = vpop.f32.mrf.mxu0
        %v734 = vadd.f32 0.0, %v733
        %v735 = vpop.f32.mrf.mxu0
        %v736 = vpop.f32.mrf.mxu0
        %v737 = vadd.f32 0.0, %v736
        %v738 = vpop.f32.mrf.mxu0
        %739 = vmatprep.mubr.bf16.mxu0 0
        %740 = vmatmul.mubr.bf16.gmra.mxu0 %v561
        %v741 = vpop.f32.mrf.mxu0
        %v742 = vadd.f32 0.0, %v741
        %v743 = vpop.f32.mrf.mxu0
        %v744 = vpop.f32.mrf.mxu0
        %v745 = vadd.f32 0.0, %v744
        %v746 = vpop.f32.mrf.mxu0
        %747 = vmatprep.mubr.bf16.mxu0 0
        %748 = vmatmul.mubr.bf16.gmra.mxu0 %v564
        %v749 = vpop.f32.mrf.mxu0
        %v750 = vadd.f32 0.0, %v749
        %v751 = vpop.f32.mrf.mxu0
        %v752 = vpop.f32.mrf.mxu0
        %v753 = vadd.f32 0.0, %v752
        %v754 = vpop.f32.mrf.mxu0
        %755 = vmatprep.mubr.bf16.mxu0 0
        %756 = vmatmul.mubr.bf16.gmra.mxu0 %v567
        %v757 = vpop.f32.mrf.mxu0
        %v758 = vadd.f32 0.0, %v757
        %v759 = vpop.f32.mrf.mxu0
        %v760 = vpop.f32.mrf.mxu0
        %v761 = vadd.f32 0.0, %v760
        %v762 = vpop.f32.mrf.mxu0
        %763 = vmatprep.mubr.bf16.mxu0 0
        %764 = vmatmul.mubr.bf16.gmra.mxu0 %v570
        %v765 = vpop.f32.mrf.mxu0
        %v766 = vadd.f32 0.0, %v765
        %v767 = vpop.f32.mrf.mxu0
        %v768 = vpop.f32.mrf.mxu0
        %v769 = vadd.f32 0.0, %v768
        %v770 = vpop.f32.mrf.mxu0
        %771 = vmatprep.mubr.bf16.mxu0 0
        %772 = vmatmul.mubr.bf16.gmra.mxu0 %v573
        %v773 = vpop.f32.mrf.mxu0
        %v774 = vadd.f32 0.0, %v773
        %v775 = vpop.f32.mrf.mxu0
        %v776 = vpop.f32.mrf.mxu0
        %v777 = vadd.f32 0.0, %v776
        %v778 = vpop.f32.mrf.mxu0
        %779 = vmatprep.mubr.bf16.mxu0 0
        %780 = vmatmul.mubr.bf16.gmra.mxu0 %v576
        %v781 = vpop.f32.mrf.mxu0
        %v782 = vadd.f32 0.0, %v781
        %v783 = vpop.f32.mrf.mxu0
        %v784 = vpop.f32.mrf.mxu0
        %v785 = vadd.f32 0.0, %v784
        %v786 = vpop.f32.mrf.mxu0
        %787 = vmatprep.mubr.bf16.mxu0 0
        %788 = vmatmul.mubr.bf16.gmra.mxu0 %v579
        %v789 = vpop.f32.mrf.mxu0
        %v790 = vadd.f32 0.0, %v789
        %v791 = vpop.f32.mrf.mxu0
        %v792 = vpop.f32.mrf.mxu0
        %v793 = vadd.f32 0.0, %v792
        %v794 = vpop.f32.mrf.mxu0
        %795 = vmatprep.mubr.bf16.mxu0 0
        %796 = vmatmul.mubr.bf16.gmra.mxu0 %v582
        %v797 = vpop.f32.mrf.mxu0
        %v798 = vadd.f32 0.0, %v797
        %v799 = vpop.f32.mrf.mxu0
        %v800 = vpop.f32.mrf.mxu0
        %v801 = vadd.f32 0.0, %v800
        %v802 = vpop.f32.mrf.mxu0
        %803 = vmatprep.mubr.bf16.mxu0 0
        %804 = vmatmul.mubr.bf16.gmra.mxu0 %v585
        %v805 = vpop.f32.mrf.mxu0
        %v806 = vadd.f32 0.0, %v805
        %v807 = vpop.f32.mrf.mxu0
        %v808 = vpop.f32.mrf.mxu0
        %v809 = vadd.f32 0.0, %v808
        %v810 = vpop.f32.mrf.mxu0
        %811 = vmatprep.mubr.bf16.mxu0 0
        %812 = vmatmul.mubr.bf16.gmra.mxu0 %v588
        %v813 = vpop.f32.mrf.mxu0
        %v814 = vadd.f32 0.0, %v813
        %v815 = vpop.f32.mrf.mxu0
        %v816 = vpop.f32.mrf.mxu0
        %v817 = vadd.f32 0.0, %v816
        %v818 = vpop.f32.mrf.mxu0
        %819 = vmatprep.mubr.bf16.mxu0 0
        %820 = vmatmul.mubr.bf16.gmra.mxu0 %v591
        %v821 = vpop.f32.mrf.mxu0
        %v822 = vadd.f32 0.0, %v821
        %v823 = vpop.f32.mrf.mxu0
        %v824 = vpop.f32.mrf.mxu0
        %v825 = vadd.f32 0.0, %v824
        %v826 = vpop.f32.mrf.mxu0
        %827 = vmatprep.mubr.bf16.mxu0 0
        %828 = vmatmul.mubr.bf16.gmra.mxu0 %v594
        %v829 = vpop.f32.mrf.mxu0
        %v830 = vadd.f32 0.0, %v829
        %v831 = vpop.f32.mrf.mxu0
        %v832 = vpop.f32.mrf.mxu0
        %v833 = vadd.f32 0.0, %v832
        %v834 = vpop.f32.mrf.mxu0
        %835 = vmatprep.mubr.bf16.mxu0 0
        %836 = vmatmul.mubr.bf16.gmra.mxu0 %v597
        %v837 = vpop.f32.mrf.mxu0
        %v838 = vadd.f32 0.0, %v837
        %v839 = vpop.f32.mrf.mxu0
        %v840 = vpop.f32.mrf.mxu0
        %v841 = vadd.f32 0.0, %v840
        %v842 = vpop.f32.mrf.mxu0
        %843 = vmatprep.mubr.bf16.mxu0 0
        %844 = vmatmul.mubr.bf16.gmra.mxu0 %v600
        %v845 = vpop.f32.mrf.mxu0
        %v846 = vadd.f32 0.0, %v845
        %v847 = vpop.f32.mrf.mxu0
        %v848 = vpop.f32.mrf.mxu0
        %v849 = vadd.f32 0.0, %v848
        %v850 = vpop.f32.mrf.mxu0
        %851 = vmatprep.mubr.bf16.mxu0 0
        %852 = vmatmul.mubr.bf16.gmra.mxu0 %v603
        %v853 = vpop.f32.mrf.mxu0
        %v854 = vadd.f32 0.0, %v853
        %v855 = vpop.f32.mrf.mxu0
        %v856 = vpop.f32.mrf.mxu0
        %v857 = vadd.f32 0.0, %v856
        %v858 = vpop.f32.mrf.mxu0
        %859 = vmatprep.mubr.bf16.mxu0 0
        %860 = vmatmul.mubr.bf16.gmra.mxu0 %v606
        %v861 = vpop.f32.mrf.mxu0
        %v862 = vadd.f32 0.0, %v861
        %v863 = vpop.f32.mrf.mxu0
        %v864 = vpop.f32.mrf.mxu0
        %v865 = vadd.f32 0.0, %v864
        %v866 = vpop.f32.mrf.mxu0
        %867 = vmatprep.mubr.bf16.mxu0 0
        %868 = vmatmul.mubr.bf16.gmra.mxu0 %v609
        %v869 = vpop.f32.mrf.mxu0
        %v870 = vadd.f32 0.0, %v869
        %v871 = vpop.f32.mrf.mxu0
        %v872 = vpop.f32.mrf.mxu0
        %v873 = vadd.f32 0.0, %v872
        %v874 = vpop.f32.mrf.mxu0
        %875 = vmatprep.mubr.bf16.mxu0 0
        %876 = vmatmul.mubr.bf16.gmra.mxu0 %v612
        %v877 = vpop.f32.mrf.mxu0
        %v878 = vadd.f32 0.0, %v877
        %v879 = vpop.f32.mrf.mxu0
        %v880 = vpop.f32.mrf.mxu0
        %v881 = vadd.f32 0.0, %v880
        %v882 = vpop.f32.mrf.mxu0
        %883 = vmatprep.mubr.bf16.mxu0 0
        %884 = vmatmul.mubr.bf16.gmra.mxu0 %v615
        %v885 = vpop.f32.mrf.mxu0
        %v886 = vadd.f32 0.0, %v885
        %v887 = vpop.f32.mrf.mxu0
        %v888 = vpop.f32.mrf.mxu0
        %v889 = vadd.f32 0.0, %v888
        %v890 = vpop.f32.mrf.mxu0
        %891 = vmatprep.mubr.bf16.mxu0 0
        %892 = vmatmul.mubr.bf16.gmra.mxu0 %v618
        %v893 = vpop.f32.mrf.mxu0
        %v894 = vadd.f32 0.0, %v893
        %v895 = vpop.f32.mrf.mxu0
        %v896 = vpop.f32.mrf.mxu0
        %v897 = vadd.f32 0.0, %v896
        %v898 = vpop.f32.mrf.mxu0
        %899 = vmatprep.mubr.bf16.mxu0 0
        %900 = vmatmul.mubr.bf16.gmra.mxu0 %v621
        %v901 = vpop.f32.mrf.mxu0
        %v902 = vadd.f32 0.0, %v901
        %v903 = vpop.f32.mrf.mxu0
        %v904 = vpop.f32.mrf.mxu0
        %v905 = vadd.f32 0.0, %v904
        %v906 = vpop.f32.mrf.mxu0
        %907 = vmatprep.mubr.bf16.mxu0 0
        %908 = vmatmul.mubr.bf16.gmra.mxu0 %v624
        %v909 = vpop.f32.mrf.mxu0
        %v910 = vadd.f32 0.0, %v909
        %v911 = vpop.f32.mrf.mxu0
        %v912 = vpop.f32.mrf.mxu0
        %v913 = vadd.f32 0.0, %v912
        %v914 = vpop.f32.mrf.mxu0
        %915 = vmatprep.mubr.bf16.mxu0 0
        %916 = vmatmul.mubr.bf16.gmra.mxu0 %v627
        %v917 = vpop.f32.mrf.mxu0
        %v918 = vadd.f32 0.0, %v917
        %v919 = vpop.f32.mrf.mxu0
        %v920 = vpop.f32.mrf.mxu0
        %v921 = vadd.f32 0.0, %v920
        %v922 = vpop.f32.mrf.mxu0
        %923 = vdwg.mxu0
        %v924 = vmin.f32 %v670, %v686
        %v925 = vmin.f32 %v673, %v689
        %v926 = vmin.f32 %v678, %v694
        %v927 = vmin.f32 %v681, %v697
        %v928 = vmin.f32 %v924, %v702
        %v929 = vmin.f32 %v925, %v705
        %v930 = vmin.f32 %v926, %v710
        %v931 = vmin.f32 %v927, %v713
        %v932 = vmin.f32 %v928, %v718
        %v933 = vmin.f32 %v929, %v721
        %v934 = vmin.f32 %v930, %v726
        %v935 = vmin.f32 %v931, %v729
        %v936 = vmin.f32 %v932, %v734
        %v937 = vmin.f32 %v933, %v737
        %v938 = vmin.f32 %v934, %v742
        %v939 = vmin.f32 %v935, %v745
        %v940 = vmin.f32 %v936, %v750
        %v941 = vmin.f32 %v937, %v753
        %v942 = vmin.f32 %v938, %v758
        %v943 = vmin.f32 %v939, %v761
        %v944 = vmin.f32 %v940, %v766
        %v945 = vmin.f32 %v941, %v769
        %v946 = vmin.f32 %v942, %v774
        %v947 = vmin.f32 %v943, %v777
        %v948 = vmin.f32 %v944, %v782
        %v949 = vmin.f32 %v945, %v785
        %v950 = vmin.f32 %v946, %v790
        %v951 = vmin.f32 %v947, %v793
        %v952 = vmin.f32 %v948, %v798
        %v953 = vmin.f32 %v949, %v801
        %v954 = vmin.f32 %v950, %v806
        %v955 = vmin.f32 %v951, %v809
        %v956 = vmin.f32 %v952, %v814
        %v957 = vmin.f32 %v953, %v817
        %v958 = vmin.f32 %v954, %v822
        %v959 = vmin.f32 %v955, %v825
        %v960 = vmin.f32 %v956, %v830
        %v961 = vmin.f32 %v957, %v833
        %v962 = vmin.f32 %v958, %v838
        %v963 = vmin.f32 %v959, %v841
        %v964 = vmin.f32 %v960, %v846
        %v965 = vmin.f32 %v961, %v849
        %v966 = vmin.f32 %v962, %v854
        %v967 = vmin.f32 %v963, %v857
        %v968 = vmin.f32 %v964, %v862
        %v969 = vmin.f32 %v965, %v865
        %v970 = vmin.f32 %v966, %v870
        %v971 = vmin.f32 %v967, %v873
        %v972 = vmin.f32 %v968, %v878
        %v973 = vmin.f32 %v969, %v881
        %v974 = vmin.f32 %v970, %v886
        %v975 = vmin.f32 %v971, %v889
        %v976 = vmin.f32 %v972, %v894
        %v977 = vmin.f32 %v973, %v897
        %v978 = vmin.f32 %v974, %v902
        %v979 = vmin.f32 %v975, %v905
        %v980 = vmin.f32 %v976, %v910
        %v981 = vmin.f32 %v977, %v913
        %v982 = vmin.f32 %v978, %v918
        %v983 = vmin.f32 %v979, %v921
        %v984 = vmin.f32 %v980, %v981
        %v985 = vmin.f32 %v982, %v983
        %v986 = vmin.f32 %v984, %v985
        %v987 = vrot.slane %v986, 4
        %v988 = vmin.f32 %v986, %v987
        %v989 = vrot.slane %v988, 2
        %v990 = vmin.f32 %v988, %v989
        %v991 = vrot.slane %v990, 1
        %v992 = vmin.f32 %v990, %v991
        %v993 = vlaneseq
        %v994 = vshrl.u32 %v993, 7
        %v995 = vadd.s32 %v994, 8
        %v996 = vadd.s32 %v994, 16
        %v997 = vadd.s32 %v994, 24
        %v998 = vadd.s32 %v994, 32
        %v999 = vadd.s32 %v994, 40
        %v1000 = vadd.s32 %v994, 48
        %v1001 = vadd.s32 %v994, 56
        %v1002 = vadd.s32 %v994, 64
        %v1003 = vadd.s32 %v994, 72
        %v1004 = vadd.s32 %v994, 80
        %v1005 = vadd.s32 %v994, 88
        %v1006 = vadd.s32 %v994, 96
        %v1007 = vadd.s32 %v994, 104
        %v1008 = vadd.s32 %v994, 112
        %v1009 = vadd.s32 %v994, 120
        %v1010 = vadd.s32 %v994, 128
        %v1011 = vadd.s32 %v994, 136
        %v1012 = vadd.s32 %v994, 144
        %v1013 = vadd.s32 %v994, 152
        %v1014 = vadd.s32 %v994, 160
        %v1015 = vadd.s32 %v994, 168
        %v1016 = vadd.s32 %v994, 176
        %v1017 = vadd.s32 %v994, 184
        %v1018 = vadd.s32 %v994, 192
        %v1019 = vadd.s32 %v994, 200
        %v1020 = vadd.s32 %v994, 208
        %v1021 = vadd.s32 %v994, 216
        %v1022 = vadd.s32 %v994, 224
        %v1023 = vadd.s32 %v994, 232
        %v1024 = vadd.s32 %v994, 240
        %v1025 = vadd.s32 %v994, 248
        %v1026 = vadd.s32 %v994, 256
        %v1027 = vadd.s32 %v994, 264
        %v1028 = vadd.s32 %v994, 272
        %v1029 = vadd.s32 %v994, 280
        %v1030 = vadd.s32 %v994, 288
        %v1031 = vadd.s32 %v994, 296
        %v1032 = vadd.s32 %v994, 304
        %v1033 = vadd.s32 %v994, 312
        %v1034 = vadd.s32 %v994, 320
        %v1035 = vadd.s32 %v994, 328
        %v1036 = vadd.s32 %v994, 336
        %v1037 = vadd.s32 %v994, 344
        %v1038 = vadd.s32 %v994, 352
        %v1039 = vadd.s32 %v994, 360
        %v1040 = vadd.s32 %v994, 368
        %v1041 = vadd.s32 %v994, 376
        %v1042 = vadd.s32 %v994, 384
        %v1043 = vadd.s32 %v994, 392
        %v1044 = vadd.s32 %v994, 400
        %v1045 = vadd.s32 %v994, 408
        %v1046 = vadd.s32 %v994, 416
        %v1047 = vadd.s32 %v994, 424
        %v1048 = vadd.s32 %v994, 432
        %v1049 = vadd.s32 %v994, 440
        %v1050 = vadd.s32 %v994, 448
        %v1051 = vadd.s32 %v994, 456
        %v1052 = vadd.s32 %v994, 464
        %v1053 = vadd.s32 %v994, 472
        %v1054 = vadd.s32 %v994, 480
        %v1055 = vadd.s32 %v994, 488
        %v1056 = vadd.s32 %v994, 496
        %v1057 = vadd.s32 %v994, 504
        %vm1058 = vcmp.eq.f32.partialorder %v670, %v992
        %vm1059 = vcmp.eq.f32.partialorder %v673, %v992
        %vm1060 = vcmp.eq.f32.partialorder %v678, %v992
        %vm1061 = vcmp.eq.f32.partialorder %v681, %v992
        %vm1062 = vcmp.eq.f32.partialorder %v686, %v992
        %vm1063 = vcmp.eq.f32.partialorder %v689, %v992
        %vm1064 = vcmp.eq.f32.partialorder %v694, %v992
        %vm1065 = vcmp.eq.f32.partialorder %v697, %v992
        %vm1066 = vcmp.eq.f32.partialorder %v702, %v992
        %vm1067 = vcmp.eq.f32.partialorder %v705, %v992
        %vm1068 = vcmp.eq.f32.partialorder %v710, %v992
        %vm1069 = vcmp.eq.f32.partialorder %v713, %v992
        %vm1070 = vcmp.eq.f32.partialorder %v718, %v992
        %vm1071 = vcmp.eq.f32.partialorder %v721, %v992
        %vm1072 = vcmp.eq.f32.partialorder %v726, %v992
        %vm1073 = vcmp.eq.f32.partialorder %v729, %v992
        %vm1074 = vcmp.eq.f32.partialorder %v734, %v992
        %vm1075 = vcmp.eq.f32.partialorder %v737, %v992
        %vm1076 = vcmp.eq.f32.partialorder %v742, %v992
        %vm1077 = vcmp.eq.f32.partialorder %v745, %v992
        %vm1078 = vcmp.eq.f32.partialorder %v750, %v992
        %vm1079 = vcmp.eq.f32.partialorder %v753, %v992
        %vm1080 = vcmp.eq.f32.partialorder %v758, %v992
        %vm1081 = vcmp.eq.f32.partialorder %v761, %v992
        %vm1082 = vcmp.eq.f32.partialorder %v766, %v992
        %vm1083 = vcmp.eq.f32.partialorder %v769, %v992
        %vm1084 = vcmp.eq.f32.partialorder %v774, %v992
        %vm1085 = vcmp.eq.f32.partialorder %v777, %v992
        %vm1086 = vcmp.eq.f32.partialorder %v782, %v992
        %vm1087 = vcmp.eq.f32.partialorder %v785, %v992
        %vm1088 = vcmp.eq.f32.partialorder %v790, %v992
        %vm1089 = vcmp.eq.f32.partialorder %v793, %v992
        %vm1090 = vcmp.eq.f32.partialorder %v798, %v992
        %vm1091 = vcmp.eq.f32.partialorder %v801, %v992
        %vm1092 = vcmp.eq.f32.partialorder %v806, %v992
        %vm1093 = vcmp.eq.f32.partialorder %v809, %v992
        %vm1094 = vcmp.eq.f32.partialorder %v814, %v992
        %vm1095 = vcmp.eq.f32.partialorder %v817, %v992
        %vm1096 = vcmp.eq.f32.partialorder %v822, %v992
        %vm1097 = vcmp.eq.f32.partialorder %v825, %v992
        %vm1098 = vcmp.eq.f32.partialorder %v830, %v992
        %vm1099 = vcmp.eq.f32.partialorder %v833, %v992
        %vm1100 = vcmp.eq.f32.partialorder %v838, %v992
        %vm1101 = vcmp.eq.f32.partialorder %v841, %v992
        %vm1102 = vcmp.eq.f32.partialorder %v846, %v992
        %vm1103 = vcmp.eq.f32.partialorder %v849, %v992
        %vm1104 = vcmp.eq.f32.partialorder %v854, %v992
        %vm1105 = vcmp.eq.f32.partialorder %v857, %v992
        %vm1106 = vcmp.eq.f32.partialorder %v862, %v992
        %vm1107 = vcmp.eq.f32.partialorder %v865, %v992
        %vm1108 = vcmp.eq.f32.partialorder %v870, %v992
        %vm1109 = vcmp.eq.f32.partialorder %v873, %v992
        %vm1110 = vcmp.eq.f32.partialorder %v878, %v992
        %vm1111 = vcmp.eq.f32.partialorder %v881, %v992
        %vm1112 = vcmp.eq.f32.partialorder %v886, %v992
        %vm1113 = vcmp.eq.f32.partialorder %v889, %v992
        %vm1114 = vcmp.eq.f32.partialorder %v894, %v992
        %vm1115 = vcmp.eq.f32.partialorder %v897, %v992
        %vm1116 = vcmp.eq.f32.partialorder %v902, %v992
        %vm1117 = vcmp.eq.f32.partialorder %v905, %v992
        %vm1118 = vcmp.eq.f32.partialorder %v910, %v992
        %vm1119 = vcmp.eq.f32.partialorder %v913, %v992
        %vm1120 = vcmp.eq.f32.partialorder %v918, %v992
        %vm1121 = vcmp.eq.f32.partialorder %v921, %v992
        %v1122 = vsel %vm1058, %v994, 512
        %v1123 = vsel %vm1059, %v995, 512
        %v1124 = vsel %vm1060, %v996, 512
        %v1125 = vsel %vm1061, %v997, 512
        %v1126 = vsel %vm1062, %v998, 512
        %v1127 = vsel %vm1063, %v999, 512
        %v1128 = vsel %vm1064, %v1000, 512
        %v1129 = vsel %vm1065, %v1001, 512
        %v1130 = vsel %vm1066, %v1002, 512
        %v1131 = vsel %vm1067, %v1003, 512
        %v1132 = vsel %vm1068, %v1004, 512
        %v1133 = vsel %vm1069, %v1005, 512
        %v1134 = vsel %vm1070, %v1006, 512
        %v1135 = vsel %vm1071, %v1007, 512
        %v1136 = vsel %vm1072, %v1008, 512
        %v1137 = vsel %vm1073, %v1009, 512
        %v1138 = vsel %vm1074, %v1010, 512
        %v1139 = vsel %vm1075, %v1011, 512
        %v1140 = vsel %vm1076, %v1012, 512
        %v1141 = vsel %vm1077, %v1013, 512
        %v1142 = vsel %vm1078, %v1014, 512
        %v1143 = vsel %vm1079, %v1015, 512
        %v1144 = vsel %vm1080, %v1016, 512
        %v1145 = vsel %vm1081, %v1017, 512
        %v1146 = vsel %vm1082, %v1018, 512
        %v1147 = vsel %vm1083, %v1019, 512
        %v1148 = vsel %vm1084, %v1020, 512
        %v1149 = vsel %vm1085, %v1021, 512
        %v1150 = vsel %vm1086, %v1022, 512
        %v1151 = vsel %vm1087, %v1023, 512
        %v1152 = vsel %vm1088, %v1024, 512
        %v1153 = vsel %vm1089, %v1025, 512
        %v1154 = vsel %vm1090, %v1026, 512
        %v1155 = vsel %vm1091, %v1027, 512
        %v1156 = vsel %vm1092, %v1028, 512
        %v1157 = vsel %vm1093, %v1029, 512
        %v1158 = vsel %vm1094, %v1030, 512
        %v1159 = vsel %vm1095, %v1031, 512
        %v1160 = vsel %vm1096, %v1032, 512
        %v1161 = vsel %vm1097, %v1033, 512
        %v1162 = vsel %vm1098, %v1034, 512
        %v1163 = vsel %vm1099, %v1035, 512
        %v1164 = vsel %vm1100, %v1036, 512
        %v1165 = vsel %vm1101, %v1037, 512
        %v1166 = vsel %vm1102, %v1038, 512
        %v1167 = vsel %vm1103, %v1039, 512
        %v1168 = vsel %vm1104, %v1040, 512
        %v1169 = vsel %vm1105, %v1041, 512
        %v1170 = vsel %vm1106, %v1042, 512
        %v1171 = vsel %vm1107, %v1043, 512
        %v1172 = vsel %vm1108, %v1044, 512
        %v1173 = vsel %vm1109, %v1045, 512
        %v1174 = vsel %vm1110, %v1046, 512
        %v1175 = vsel %vm1111, %v1047, 512
        %v1176 = vsel %vm1112, %v1048, 512
        %v1177 = vsel %vm1113, %v1049, 512
        %v1178 = vsel %vm1114, %v1050, 512
        %v1179 = vsel %vm1115, %v1051, 512
        %v1180 = vsel %vm1116, %v1052, 512
        %v1181 = vsel %vm1117, %v1053, 512
        %v1182 = vsel %vm1118, %v1054, 512
        %v1183 = vsel %vm1119, %v1055, 512
        %v1184 = vsel %vm1120, %v1056, 512
        %v1185 = vsel %vm1121, %v1057, 512
        %vm1186 = vcmp.lt.s32.totalorder %v1122, %v1126
        %v1187 = vsel %vm1186, %v1122, %v1126
        %vm1188 = vcmp.lt.s32.totalorder %v1123, %v1127
        %v1189 = vsel %vm1188, %v1123, %v1127
        %vm1190 = vcmp.lt.s32.totalorder %v1124, %v1128
        %v1191 = vsel %vm1190, %v1124, %v1128
        %vm1192 = vcmp.lt.s32.totalorder %v1125, %v1129
        %v1193 = vsel %vm1192, %v1125, %v1129
        %vm1194 = vcmp.lt.s32.totalorder %v1187, %v1130
        %v1195 = vsel %vm1194, %v1187, %v1130
        %vm1196 = vcmp.lt.s32.totalorder %v1189, %v1131
        %v1197 = vsel %vm1196, %v1189, %v1131
        %vm1198 = vcmp.lt.s32.totalorder %v1191, %v1132
        %v1199 = vsel %vm1198, %v1191, %v1132
        %vm1200 = vcmp.lt.s32.totalorder %v1193, %v1133
        %v1201 = vsel %vm1200, %v1193, %v1133
        %vm1202 = vcmp.lt.s32.totalorder %v1195, %v1134
        %v1203 = vsel %vm1202, %v1195, %v1134
        %vm1204 = vcmp.lt.s32.totalorder %v1197, %v1135
        %v1205 = vsel %vm1204, %v1197, %v1135
        %vm1206 = vcmp.lt.s32.totalorder %v1199, %v1136
        %v1207 = vsel %vm1206, %v1199, %v1136
        %vm1208 = vcmp.lt.s32.totalorder %v1201, %v1137
        %v1209 = vsel %vm1208, %v1201, %v1137
        %vm1210 = vcmp.lt.s32.totalorder %v1203, %v1138
        %v1211 = vsel %vm1210, %v1203, %v1138
        %vm1212 = vcmp.lt.s32.totalorder %v1205, %v1139
        %v1213 = vsel %vm1212, %v1205, %v1139
        %vm1214 = vcmp.lt.s32.totalorder %v1207, %v1140
        %v1215 = vsel %vm1214, %v1207, %v1140
        %vm1216 = vcmp.lt.s32.totalorder %v1209, %v1141
        %v1217 = vsel %vm1216, %v1209, %v1141
        %vm1218 = vcmp.lt.s32.totalorder %v1211, %v1142
        %v1219 = vsel %vm1218, %v1211, %v1142
        %vm1220 = vcmp.lt.s32.totalorder %v1213, %v1143
        %v1221 = vsel %vm1220, %v1213, %v1143
        %vm1222 = vcmp.lt.s32.totalorder %v1215, %v1144
        %v1223 = vsel %vm1222, %v1215, %v1144
        %vm1224 = vcmp.lt.s32.totalorder %v1217, %v1145
        %v1225 = vsel %vm1224, %v1217, %v1145
        %vm1226 = vcmp.lt.s32.totalorder %v1219, %v1146
        %v1227 = vsel %vm1226, %v1219, %v1146
        %vm1228 = vcmp.lt.s32.totalorder %v1221, %v1147
        %v1229 = vsel %vm1228, %v1221, %v1147
        %vm1230 = vcmp.lt.s32.totalorder %v1223, %v1148
        %v1231 = vsel %vm1230, %v1223, %v1148
        %vm1232 = vcmp.lt.s32.totalorder %v1225, %v1149
        %v1233 = vsel %vm1232, %v1225, %v1149
        %vm1234 = vcmp.lt.s32.totalorder %v1227, %v1150
        %v1235 = vsel %vm1234, %v1227, %v1150
        %vm1236 = vcmp.lt.s32.totalorder %v1229, %v1151
        %v1237 = vsel %vm1236, %v1229, %v1151
        %vm1238 = vcmp.lt.s32.totalorder %v1231, %v1152
        %v1239 = vsel %vm1238, %v1231, %v1152
        %vm1240 = vcmp.lt.s32.totalorder %v1233, %v1153
        %v1241 = vsel %vm1240, %v1233, %v1153
        %vm1242 = vcmp.lt.s32.totalorder %v1235, %v1154
        %v1243 = vsel %vm1242, %v1235, %v1154
        %vm1244 = vcmp.lt.s32.totalorder %v1237, %v1155
        %v1245 = vsel %vm1244, %v1237, %v1155
        %vm1246 = vcmp.lt.s32.totalorder %v1239, %v1156
        %v1247 = vsel %vm1246, %v1239, %v1156
        %vm1248 = vcmp.lt.s32.totalorder %v1241, %v1157
        %v1249 = vsel %vm1248, %v1241, %v1157
        %vm1250 = vcmp.lt.s32.totalorder %v1243, %v1158
        %v1251 = vsel %vm1250, %v1243, %v1158
        %vm1252 = vcmp.lt.s32.totalorder %v1245, %v1159
        %v1253 = vsel %vm1252, %v1245, %v1159
        %vm1254 = vcmp.lt.s32.totalorder %v1247, %v1160
        %v1255 = vsel %vm1254, %v1247, %v1160
        %vm1256 = vcmp.lt.s32.totalorder %v1249, %v1161
        %v1257 = vsel %vm1256, %v1249, %v1161
        %vm1258 = vcmp.lt.s32.totalorder %v1251, %v1162
        %v1259 = vsel %vm1258, %v1251, %v1162
        %vm1260 = vcmp.lt.s32.totalorder %v1253, %v1163
        %v1261 = vsel %vm1260, %v1253, %v1163
        %vm1262 = vcmp.lt.s32.totalorder %v1255, %v1164
        %v1263 = vsel %vm1262, %v1255, %v1164
        %vm1264 = vcmp.lt.s32.totalorder %v1257, %v1165
        %v1265 = vsel %vm1264, %v1257, %v1165
        %vm1266 = vcmp.lt.s32.totalorder %v1259, %v1166
        %v1267 = vsel %vm1266, %v1259, %v1166
        %vm1268 = vcmp.lt.s32.totalorder %v1261, %v1167
        %v1269 = vsel %vm1268, %v1261, %v1167
        %vm1270 = vcmp.lt.s32.totalorder %v1263, %v1168
        %v1271 = vsel %vm1270, %v1263, %v1168
        %vm1272 = vcmp.lt.s32.totalorder %v1265, %v1169
        %v1273 = vsel %vm1272, %v1265, %v1169
        %vm1274 = vcmp.lt.s32.totalorder %v1267, %v1170
        %v1275 = vsel %vm1274, %v1267, %v1170
        %vm1276 = vcmp.lt.s32.totalorder %v1269, %v1171
        %v1277 = vsel %vm1276, %v1269, %v1171
        %vm1278 = vcmp.lt.s32.totalorder %v1271, %v1172
        %v1279 = vsel %vm1278, %v1271, %v1172
        %vm1280 = vcmp.lt.s32.totalorder %v1273, %v1173
        %v1281 = vsel %vm1280, %v1273, %v1173
        %vm1282 = vcmp.lt.s32.totalorder %v1275, %v1174
        %v1283 = vsel %vm1282, %v1275, %v1174
        %vm1284 = vcmp.lt.s32.totalorder %v1277, %v1175
        %v1285 = vsel %vm1284, %v1277, %v1175
        %vm1286 = vcmp.lt.s32.totalorder %v1279, %v1176
        %v1287 = vsel %vm1286, %v1279, %v1176
        %vm1288 = vcmp.lt.s32.totalorder %v1281, %v1177
        %v1289 = vsel %vm1288, %v1281, %v1177
        %vm1290 = vcmp.lt.s32.totalorder %v1283, %v1178
        %v1291 = vsel %vm1290, %v1283, %v1178
        %vm1292 = vcmp.lt.s32.totalorder %v1285, %v1179
        %v1293 = vsel %vm1292, %v1285, %v1179
        %vm1294 = vcmp.lt.s32.totalorder %v1287, %v1180
        %v1295 = vsel %vm1294, %v1287, %v1180
        %vm1296 = vcmp.lt.s32.totalorder %v1289, %v1181
        %v1297 = vsel %vm1296, %v1289, %v1181
        %vm1298 = vcmp.lt.s32.totalorder %v1291, %v1182
        %v1299 = vsel %vm1298, %v1291, %v1182
        %vm1300 = vcmp.lt.s32.totalorder %v1293, %v1183
        %v1301 = vsel %vm1300, %v1293, %v1183
        %vm1302 = vcmp.lt.s32.totalorder %v1295, %v1184
        %v1303 = vsel %vm1302, %v1295, %v1184
        %vm1304 = vcmp.lt.s32.totalorder %v1297, %v1185
        %v1305 = vsel %vm1304, %v1297, %v1185
        %vm1306 = vcmp.lt.s32.totalorder %v1299, %v1301
        %v1307 = vsel %vm1306, %v1299, %v1301
        %vm1308 = vcmp.lt.s32.totalorder %v1303, %v1305
        %v1309 = vsel %vm1308, %v1303, %v1305
        %vm1310 = vcmp.lt.s32.totalorder %v1307, %v1309
        %v1311 = vsel %vm1310, %v1307, %v1309
        %v1312 = vrot.slane %v1311, 4
        %vm1313 = vcmp.lt.s32.totalorder %v1311, %v1312
        %v1314 = vsel %vm1313, %v1311, %v1312
        %v1315 = vrot.slane %v1314, 2
        %vm1316 = vcmp.lt.s32.totalorder %v1314, %v1315
        %v1317 = vsel %vm1316, %v1314, %v1315
        %v1318 = vrot.slane %v1317, 1
        %vm1319 = vcmp.lt.s32.totalorder %v1317, %v1318
        %v1320 = vsel %vm1319, %v1317, %v1318
        %vm1321 = vcmp.eq.s32.totalorder %v1122, %v1320
        %vm1322 = vcmp.eq.s32.totalorder %v1123, %v1320
        %vm1323 = vcmp.eq.s32.totalorder %v1124, %v1320
        %vm1324 = vcmp.eq.s32.totalorder %v1125, %v1320
        %vm1325 = vcmp.eq.s32.totalorder %v1126, %v1320
        %vm1326 = vcmp.eq.s32.totalorder %v1127, %v1320
        %vm1327 = vcmp.eq.s32.totalorder %v1128, %v1320
        %vm1328 = vcmp.eq.s32.totalorder %v1129, %v1320
        %vm1329 = vcmp.eq.s32.totalorder %v1130, %v1320
        %vm1330 = vcmp.eq.s32.totalorder %v1131, %v1320
        %vm1331 = vcmp.eq.s32.totalorder %v1132, %v1320
        %vm1332 = vcmp.eq.s32.totalorder %v1133, %v1320
        %vm1333 = vcmp.eq.s32.totalorder %v1134, %v1320
        %vm1334 = vcmp.eq.s32.totalorder %v1135, %v1320
        %vm1335 = vcmp.eq.s32.totalorder %v1136, %v1320
        %vm1336 = vcmp.eq.s32.totalorder %v1137, %v1320
        %vm1337 = vcmp.eq.s32.totalorder %v1138, %v1320
        %vm1338 = vcmp.eq.s32.totalorder %v1139, %v1320
        %vm1339 = vcmp.eq.s32.totalorder %v1140, %v1320
        %vm1340 = vcmp.eq.s32.totalorder %v1141, %v1320
        %vm1341 = vcmp.eq.s32.totalorder %v1142, %v1320
        %vm1342 = vcmp.eq.s32.totalorder %v1143, %v1320
        %vm1343 = vcmp.eq.s32.totalorder %v1144, %v1320
        %vm1344 = vcmp.eq.s32.totalorder %v1145, %v1320
        %vm1345 = vcmp.eq.s32.totalorder %v1146, %v1320
        %vm1346 = vcmp.eq.s32.totalorder %v1147, %v1320
        %vm1347 = vcmp.eq.s32.totalorder %v1148, %v1320
        %vm1348 = vcmp.eq.s32.totalorder %v1149, %v1320
        %vm1349 = vcmp.eq.s32.totalorder %v1150, %v1320
        %vm1350 = vcmp.eq.s32.totalorder %v1151, %v1320
        %vm1351 = vcmp.eq.s32.totalorder %v1152, %v1320
        %vm1352 = vcmp.eq.s32.totalorder %v1153, %v1320
        %vm1353 = vcmp.eq.s32.totalorder %v1154, %v1320
        %vm1354 = vcmp.eq.s32.totalorder %v1155, %v1320
        %vm1355 = vcmp.eq.s32.totalorder %v1156, %v1320
        %vm1356 = vcmp.eq.s32.totalorder %v1157, %v1320
        %vm1357 = vcmp.eq.s32.totalorder %v1158, %v1320
        %vm1358 = vcmp.eq.s32.totalorder %v1159, %v1320
        %vm1359 = vcmp.eq.s32.totalorder %v1160, %v1320
        %vm1360 = vcmp.eq.s32.totalorder %v1161, %v1320
        %vm1361 = vcmp.eq.s32.totalorder %v1162, %v1320
        %vm1362 = vcmp.eq.s32.totalorder %v1163, %v1320
        %vm1363 = vcmp.eq.s32.totalorder %v1164, %v1320
        %vm1364 = vcmp.eq.s32.totalorder %v1165, %v1320
        %vm1365 = vcmp.eq.s32.totalorder %v1166, %v1320
        %vm1366 = vcmp.eq.s32.totalorder %v1167, %v1320
        %vm1367 = vcmp.eq.s32.totalorder %v1168, %v1320
        %vm1368 = vcmp.eq.s32.totalorder %v1169, %v1320
        %vm1369 = vcmp.eq.s32.totalorder %v1170, %v1320
        %vm1370 = vcmp.eq.s32.totalorder %v1171, %v1320
        %vm1371 = vcmp.eq.s32.totalorder %v1172, %v1320
        %vm1372 = vcmp.eq.s32.totalorder %v1173, %v1320
        %vm1373 = vcmp.eq.s32.totalorder %v1174, %v1320
        %vm1374 = vcmp.eq.s32.totalorder %v1175, %v1320
        %vm1375 = vcmp.eq.s32.totalorder %v1176, %v1320
        %vm1376 = vcmp.eq.s32.totalorder %v1177, %v1320
        %vm1377 = vcmp.eq.s32.totalorder %v1178, %v1320
        %vm1378 = vcmp.eq.s32.totalorder %v1179, %v1320
        %vm1379 = vcmp.eq.s32.totalorder %v1180, %v1320
        %vm1380 = vcmp.eq.s32.totalorder %v1181, %v1320
        %vm1381 = vcmp.eq.s32.totalorder %v1182, %v1320
        %vm1382 = vcmp.eq.s32.totalorder %v1183, %v1320
        %vm1383 = vcmp.eq.s32.totalorder %v1184, %v1320
        %vm1384 = vcmp.eq.s32.totalorder %v1185, %v1320
        %v1385 = vsel %vm1321, 1, 0
        %v1386 = vsel %vm1322, 1, 0
        %v1387 = vsel %vm1323, 1, 0
        %v1388 = vsel %vm1324, 1, 0
        %v1389 = vsel %vm1325, 1, 0
        %v1390 = vsel %vm1326, 1, 0
        %v1391 = vsel %vm1327, 1, 0
        %v1392 = vsel %vm1328, 1, 0
        %v1393 = vsel %vm1329, 1, 0
        %v1394 = vsel %vm1330, 1, 0
        %v1395 = vsel %vm1331, 1, 0
        %v1396 = vsel %vm1332, 1, 0
        %v1397 = vsel %vm1333, 1, 0
        %v1398 = vsel %vm1334, 1, 0
        %v1399 = vsel %vm1335, 1, 0
        %v1400 = vsel %vm1336, 1, 0
        %v1401 = vsel %vm1337, 1, 0
        %v1402 = vsel %vm1338, 1, 0
        %v1403 = vsel %vm1339, 1, 0
        %v1404 = vsel %vm1340, 1, 0
        %v1405 = vsel %vm1341, 1, 0
        %v1406 = vsel %vm1342, 1, 0
        %v1407 = vsel %vm1343, 1, 0
        %v1408 = vsel %vm1344, 1, 0
        %v1409 = vsel %vm1345, 1, 0
        %v1410 = vsel %vm1346, 1, 0
        %v1411 = vsel %vm1347, 1, 0
        %v1412 = vsel %vm1348, 1, 0
        %v1413 = vsel %vm1349, 1, 0
        %v1414 = vsel %vm1350, 1, 0
        %v1415 = vsel %vm1351, 1, 0
        %v1416 = vsel %vm1352, 1, 0
        %v1417 = vsel %vm1353, 1, 0
        %v1418 = vsel %vm1354, 1, 0
        %v1419 = vsel %vm1355, 1, 0
        %v1420 = vsel %vm1356, 1, 0
        %v1421 = vsel %vm1357, 1, 0
        %v1422 = vsel %vm1358, 1, 0
        %v1423 = vsel %vm1359, 1, 0
        %v1424 = vsel %vm1360, 1, 0
        %v1425 = vsel %vm1361, 1, 0
        %v1426 = vsel %vm1362, 1, 0
        %v1427 = vsel %vm1363, 1, 0
        %v1428 = vsel %vm1364, 1, 0
        %v1429 = vsel %vm1365, 1, 0
        %v1430 = vsel %vm1366, 1, 0
        %v1431 = vsel %vm1367, 1, 0
        %v1432 = vsel %vm1368, 1, 0
        %v1433 = vsel %vm1369, 1, 0
        %v1434 = vsel %vm1370, 1, 0
        %v1435 = vsel %vm1371, 1, 0
        %v1436 = vsel %vm1372, 1, 0
        %v1437 = vsel %vm1373, 1, 0
        %v1438 = vsel %vm1374, 1, 0
        %v1439 = vsel %vm1375, 1, 0
        %v1440 = vsel %vm1376, 1, 0
        %v1441 = vsel %vm1377, 1, 0
        %v1442 = vsel %vm1378, 1, 0
        %v1443 = vsel %vm1379, 1, 0
        %v1444 = vsel %vm1380, 1, 0
        %v1445 = vsel %vm1381, 1, 0
        %v1446 = vsel %vm1382, 1, 0
        %v1447 = vsel %vm1383, 1, 0
        %v1448 = vsel %vm1384, 1, 0
        %v1449 = vcvt.s32.f32 %v1385
        %v1450 = vcvt.s32.f32 %v1386
        %v1451 = vcvt.s32.f32 %v1387
        %v1452 = vcvt.s32.f32 %v1388
        %v1453 = vcvt.s32.f32 %v1389
        %v1454 = vcvt.s32.f32 %v1390
        %v1455 = vcvt.s32.f32 %v1391
        %v1456 = vcvt.s32.f32 %v1392
        %v1457 = vcvt.s32.f32 %v1393
        %v1458 = vcvt.s32.f32 %v1394
        %v1459 = vcvt.s32.f32 %v1395
        %v1460 = vcvt.s32.f32 %v1396
        %v1461 = vcvt.s32.f32 %v1397
        %v1462 = vcvt.s32.f32 %v1398
        %v1463 = vcvt.s32.f32 %v1399
        %v1464 = vcvt.s32.f32 %v1400
        %v1465 = vcvt.s32.f32 %v1401
        %v1466 = vcvt.s32.f32 %v1402
        %v1467 = vcvt.s32.f32 %v1403
        %v1468 = vcvt.s32.f32 %v1404
        %v1469 = vcvt.s32.f32 %v1405
        %v1470 = vcvt.s32.f32 %v1406
        %v1471 = vcvt.s32.f32 %v1407
        %v1472 = vcvt.s32.f32 %v1408
        %v1473 = vcvt.s32.f32 %v1409
        %v1474 = vcvt.s32.f32 %v1410
        %v1475 = vcvt.s32.f32 %v1411
        %v1476 = vcvt.s32.f32 %v1412
        %v1477 = vcvt.s32.f32 %v1413
        %v1478 = vcvt.s32.f32 %v1414
        %v1479 = vcvt.s32.f32 %v1415
        %v1480 = vcvt.s32.f32 %v1416
        %v1481 = vcvt.s32.f32 %v1417
        %v1482 = vcvt.s32.f32 %v1418
        %v1483 = vcvt.s32.f32 %v1419
        %v1484 = vcvt.s32.f32 %v1420
        %v1485 = vcvt.s32.f32 %v1421
        %v1486 = vcvt.s32.f32 %v1422
        %v1487 = vcvt.s32.f32 %v1423
        %v1488 = vcvt.s32.f32 %v1424
        %v1489 = vcvt.s32.f32 %v1425
        %v1490 = vcvt.s32.f32 %v1426
        %v1491 = vcvt.s32.f32 %v1427
        %v1492 = vcvt.s32.f32 %v1428
        %v1493 = vcvt.s32.f32 %v1429
        %v1494 = vcvt.s32.f32 %v1430
        %v1495 = vcvt.s32.f32 %v1431
        %v1496 = vcvt.s32.f32 %v1432
        %v1497 = vcvt.s32.f32 %v1433
        %v1498 = vcvt.s32.f32 %v1434
        %v1499 = vcvt.s32.f32 %v1435
        %v1500 = vcvt.s32.f32 %v1436
        %v1501 = vcvt.s32.f32 %v1437
        %v1502 = vcvt.s32.f32 %v1438
        %v1503 = vcvt.s32.f32 %v1439
        %v1504 = vcvt.s32.f32 %v1440
        %v1505 = vcvt.s32.f32 %v1441
        %v1506 = vcvt.s32.f32 %v1442
        %v1507 = vcvt.s32.f32 %v1443
        %v1508 = vcvt.s32.f32 %v1444
        %v1509 = vcvt.s32.f32 %v1445
        %v1510 = vcvt.s32.f32 %v1446
        %v1511 = vcvt.s32.f32 %v1447
        %v1512 = vcvt.s32.f32 %v1448
        %v1513 = vpack.c.bf16 %v1450, %v1449
        %v1514 = vpack.c.bf16 %v1452, %v1451
        %v1515 = vpack.c.bf16 %v1454, %v1453
        %v1516 = vpack.c.bf16 %v1456, %v1455
        %v1517 = vpack.c.bf16 %v1458, %v1457
        %v1518 = vpack.c.bf16 %v1460, %v1459
        %v1519 = vpack.c.bf16 %v1462, %v1461
        %v1520 = vpack.c.bf16 %v1464, %v1463
        %v1521 = vpack.c.bf16 %v1466, %v1465
        %v1522 = vpack.c.bf16 %v1468, %v1467
        %v1523 = vpack.c.bf16 %v1470, %v1469
        %v1524 = vpack.c.bf16 %v1472, %v1471
        %v1525 = vpack.c.bf16 %v1474, %v1473
        %v1526 = vpack.c.bf16 %v1476, %v1475
        %v1527 = vpack.c.bf16 %v1478, %v1477
        %v1528 = vpack.c.bf16 %v1480, %v1479
        %v1529 = vpack.c.bf16 %v1482, %v1481
        %v1530 = vpack.c.bf16 %v1484, %v1483
        %v1531 = vpack.c.bf16 %v1486, %v1485
        %v1532 = vpack.c.bf16 %v1488, %v1487
        %v1533 = vpack.c.bf16 %v1490, %v1489
        %v1534 = vpack.c.bf16 %v1492, %v1491
        %v1535 = vpack.c.bf16 %v1494, %v1493
        %v1536 = vpack.c.bf16 %v1496, %v1495
        %v1537 = vpack.c.bf16 %v1498, %v1497
        %v1538 = vpack.c.bf16 %v1500, %v1499
        %v1539 = vpack.c.bf16 %v1502, %v1501
        %v1540 = vpack.c.bf16 %v1504, %v1503
        %v1541 = vpack.c.bf16 %v1506, %v1505
        %v1542 = vpack.c.bf16 %v1508, %v1507
        %v1543 = vpack.c.bf16 %v1510, %v1509
        %v1544 = vpack.c.bf16 %v1512, %v1511
        %v1545 = vld [vmem:[%s2] sm:$0xff]
        %v1546 = vld [vmem:[%s2 + $0x8] sm:$0xff]
        %v1547 = vld [vmem:[%s2 + $0x10] sm:$0xff]
        %v1548 = vld [vmem:[%s2 + $0x18] sm:$0xff]
        %v1549 = vld [vmem:[%s2 + $0x20] sm:$0xff]
        %v1550 = vld [vmem:[%s2 + $0x28] sm:$0xff]
        %v1551 = vld [vmem:[%s2 + $0x30] sm:$0xff]
        %v1552 = vld [vmem:[%s2 + $0x38] sm:$0xff]
        %v1553 = vld [vmem:[%s3] sm:$0xff]
        %v1554 = vld [vmem:[%s3 + $0x8] sm:$0xff]
        %v1555 = vld [vmem:[%s3 + $0x10] sm:$0xff]
        %v1556 = vld [vmem:[%s3 + $0x18] sm:$0xff]
        %v1557 = vld [vmem:[%s3 + $0x20] sm:$0xff]
        %v1558 = vld [vmem:[%s3 + $0x28] sm:$0xff]
        %v1559 = vld [vmem:[%s3 + $0x30] sm:$0xff]
        %v1560 = vld [vmem:[%s3 + $0x38] sm:$0xff]
        %v1569 = vunpack.c.l.b16 %v1553
        %v1570 = vunpack.c.h.b16 %v1553
        %v1571 = vunpack.c.l.b16 %v1554
        %v1572 = vunpack.c.h.b16 %v1554
        %v1573 = vunpack.c.l.b16 %v1555
        %v1574 = vunpack.c.h.b16 %v1555
        %v1575 = vunpack.c.l.b16 %v1556
        %v1576 = vunpack.c.h.b16 %v1556
        %v1577 = vunpack.c.l.b16 %v1557
        %v1578 = vunpack.c.h.b16 %v1557
        %v1579 = vunpack.c.l.b16 %v1558
        %v1580 = vunpack.c.h.b16 %v1558
        %v1581 = vunpack.c.l.b16 %v1559
        %v1582 = vunpack.c.h.b16 %v1559
        %v1583 = vunpack.c.l.b16 %v1560
        %v1584 = vunpack.c.h.b16 %v1560
        %v1585 = vpack.c.b16 %v1573, %v1569
        %v1586 = vpack.c.b16 %v1574, %v1570
        %v1587 = vpack.c.b16 %v1575, %v1571
        %v1588 = vpack.c.b16 %v1576, %v1572
        %v1589 = vpack.c.b16 %v1581, %v1577
        %v1590 = vpack.c.b16 %v1582, %v1578
        %v1591 = vpack.c.b16 %v1583, %v1579
        %v1592 = vpack.c.b16 %v1584, %v1580
        %1601 = vmatprep.subr.bf16.mxu0 0
        %1602 = vmatpush1.bf16.msra.mxu0 %v1520
        %1603 = vmatprep.subr.bf16.mxu0 0
        %1604 = vmatpush1.bf16.msra.mxu0 %v1519
        %1605 = vmatprep.subr.bf16.mxu0 0
        %1606 = vmatpush1.bf16.msra.mxu0 %v1518
        %1607 = vmatprep.subr.bf16.mxu0 0
        %1608 = vmatpush1.bf16.msra.mxu0 %v1517
        %1609 = vmatprep.subr.bf16.mxu0 0
        %1610 = vmatpush1.bf16.msra.mxu0 %v1516
        %1611 = vmatprep.subr.bf16.mxu0 0
        %1612 = vmatpush1.bf16.msra.mxu0 %v1515
        %1613 = vmatprep.subr.bf16.mxu0 0
        %1614 = vmatpush1.bf16.msra.mxu0 %v1514
        %1615 = vmatprep.subr.bf16.mxu0 0
        %1616 = vmatpush1.bf16.msra.mxu0 %v1513
        %1617 = vmatprep.subr.bf16.mxu0 0
        %1618 = vmatpush2.bf16.msra.mxu0 %v1528
        %1619 = vmatprep.subr.bf16.mxu0 0
        %1620 = vmatpush2.bf16.msra.mxu0 %v1527
        %1621 = vmatprep.subr.bf16.mxu0 0
        %1622 = vmatpush2.bf16.msra.mxu0 %v1526
        %1623 = vmatprep.subr.bf16.mxu0 0
        %1624 = vmatpush2.bf16.msra.mxu0 %v1525
        %1625 = vmatprep.subr.bf16.mxu0 0
        %1626 = vmatpush2.bf16.msra.mxu0 %v1524
        %1627 = vmatprep.subr.bf16.mxu0 0
        %1628 = vmatpush2.bf16.msra.mxu0 %v1523
        %1629 = vmatprep.subr.bf16.mxu0 0
        %1630 = vmatpush2.bf16.msra.mxu0 %v1522
        %1631 = vmatprep.subr.bf16.mxu0 0
        %1632 = vmatpush2.bf16.msra.mxu0 %v1521
        %1633 = vmatprep.mubr.bf16.mxu0 %v1586
        %1634 = vmatmul.mubr.bf16.gmra.mxu0 %v1585
        %v1635 = vpop.f32.mrf.mxu0
        %v1636 = vadd.f32 0.0, %v1635
        %v1637 = vpop.f32.mrf.mxu0
        %v1638 = vpop.f32.mrf.mxu0
        %v1639 = vadd.f32 0.0, %v1638
        %v1640 = vpop.f32.mrf.mxu0
        %1641 = vmatprep.mubr.bf16.mxu0 %v1590
        %1642 = vmatmul.mubr.bf16.gmra.mxu0 %v1589
        %v1643 = vpop.f32.mrf.mxu0
        %v1644 = vadd.f32 0.0, %v1643
        %v1645 = vpop.f32.mrf.mxu0
        %v1646 = vpop.f32.mrf.mxu0
        %v1647 = vadd.f32 0.0, %v1646
        %v1648 = vpop.f32.mrf.mxu0
        %1649 = vdwg.mxu0
        %1650 = vmatprep.subr.bf16.mxu0 0
        %1651 = vmatpush1.bf16.msra.mxu0 %v1536
        %1652 = vmatprep.subr.bf16.mxu0 0
        %1653 = vmatpush1.bf16.msra.mxu0 %v1535
        %1654 = vmatprep.subr.bf16.mxu0 0
        %1655 = vmatpush1.bf16.msra.mxu0 %v1534
        %1656 = vmatprep.subr.bf16.mxu0 0
        %1657 = vmatpush1.bf16.msra.mxu0 %v1533
        %1658 = vmatprep.subr.bf16.mxu0 0
        %1659 = vmatpush1.bf16.msra.mxu0 %v1532
        %1660 = vmatprep.subr.bf16.mxu0 0
        %1661 = vmatpush1.bf16.msra.mxu0 %v1531
        %1662 = vmatprep.subr.bf16.mxu0 0
        %1663 = vmatpush1.bf16.msra.mxu0 %v1530
        %1664 = vmatprep.subr.bf16.mxu0 0
        %1665 = vmatpush1.bf16.msra.mxu0 %v1529
        %1666 = vmatprep.subr.bf16.mxu0 0
        %1667 = vmatpush2.bf16.msra.mxu0 %v1544
        %1668 = vmatprep.subr.bf16.mxu0 0
        %1669 = vmatpush2.bf16.msra.mxu0 %v1543
        %1670 = vmatprep.subr.bf16.mxu0 0
        %1671 = vmatpush2.bf16.msra.mxu0 %v1542
        %1672 = vmatprep.subr.bf16.mxu0 0
        %1673 = vmatpush2.bf16.msra.mxu0 %v1541
        %1674 = vmatprep.subr.bf16.mxu0 0
        %1675 = vmatpush2.bf16.msra.mxu0 %v1540
        %1676 = vmatprep.subr.bf16.mxu0 0
        %1677 = vmatpush2.bf16.msra.mxu0 %v1539
        %1678 = vmatprep.subr.bf16.mxu0 0
        %1679 = vmatpush2.bf16.msra.mxu0 %v1538
        %1680 = vmatprep.subr.bf16.mxu0 0
        %1681 = vmatpush2.bf16.msra.mxu0 %v1537
        %1682 = vmatprep.mubr.bf16.mxu0 %v1588
        %1683 = vmatmul.mubr.bf16.gmra.mxu0 %v1587
        %v1684 = vpop.f32.mrf.mxu0
        %v1685 = vadd.f32 %v1636, %v1684
        %v1686 = vpop.f32.mrf.mxu0
        %v1687 = vpop.f32.mrf.mxu0
        %v1688 = vadd.f32 %v1639, %v1687
        %v1689 = vpop.f32.mrf.mxu0
        %1690 = vmatprep.mubr.bf16.mxu0 %v1592
        %1691 = vmatmul.mubr.bf16.gmra.mxu0 %v1591
        %v1692 = vpop.f32.mrf.mxu0
        %v1693 = vadd.f32 %v1644, %v1692
        %v1694 = vpop.f32.mrf.mxu0
        %v1695 = vpop.f32.mrf.mxu0
        %v1696 = vadd.f32 %v1647, %v1695
        %v1697 = vpop.f32.mrf.mxu0
        %1698 = vdwg.mxu0
        %v1707 = vunpack.c.l.b16 %v1545
        %v1708 = vunpack.c.h.b16 %v1545
        %v1709 = vunpack.c.l.b16 %v1546
        %v1710 = vunpack.c.h.b16 %v1546
        %v1711 = vunpack.c.l.b16 %v1547
        %v1712 = vunpack.c.h.b16 %v1547
        %v1713 = vunpack.c.l.b16 %v1548
        %v1714 = vunpack.c.h.b16 %v1548
        %v1715 = vunpack.c.l.b16 %v1549
        %v1716 = vunpack.c.h.b16 %v1549
        %v1717 = vunpack.c.l.b16 %v1550
        %v1718 = vunpack.c.h.b16 %v1550
        %v1719 = vunpack.c.l.b16 %v1551
        %v1720 = vunpack.c.h.b16 %v1551
        %v1721 = vunpack.c.l.b16 %v1552
        %v1722 = vunpack.c.h.b16 %v1552
        %v1723 = vpack.c.b16 %v1711, %v1707
        %v1724 = vpack.c.b16 %v1712, %v1708
        %v1725 = vpack.c.b16 %v1713, %v1709
        %v1726 = vpack.c.b16 %v1714, %v1710
        %v1727 = vpack.c.b16 %v1719, %v1715
        %v1728 = vpack.c.b16 %v1720, %v1716
        %v1729 = vpack.c.b16 %v1721, %v1717
        %v1730 = vpack.c.b16 %v1722, %v1718
        %1739 = vmatprep.subr.bf16.mxu0 0
        %1740 = vmatpush1.bf16.msra.mxu0 %v1520
        %1741 = vmatprep.subr.bf16.mxu0 0
        %1742 = vmatpush1.bf16.msra.mxu0 %v1519
        %1743 = vmatprep.subr.bf16.mxu0 0
        %1744 = vmatpush1.bf16.msra.mxu0 %v1518
        %1745 = vmatprep.subr.bf16.mxu0 0
        %1746 = vmatpush1.bf16.msra.mxu0 %v1517
        %1747 = vmatprep.subr.bf16.mxu0 0
        %1748 = vmatpush1.bf16.msra.mxu0 %v1516
        %1749 = vmatprep.subr.bf16.mxu0 0
        %1750 = vmatpush1.bf16.msra.mxu0 %v1515
        %1751 = vmatprep.subr.bf16.mxu0 0
        %1752 = vmatpush1.bf16.msra.mxu0 %v1514
        %1753 = vmatprep.subr.bf16.mxu0 0
        %1754 = vmatpush1.bf16.msra.mxu0 %v1513
        %1755 = vmatprep.subr.bf16.mxu0 0
        %1756 = vmatpush2.bf16.msra.mxu0 %v1528
        %1757 = vmatprep.subr.bf16.mxu0 0
        %1758 = vmatpush2.bf16.msra.mxu0 %v1527
        %1759 = vmatprep.subr.bf16.mxu0 0
        %1760 = vmatpush2.bf16.msra.mxu0 %v1526
        %1761 = vmatprep.subr.bf16.mxu0 0
        %1762 = vmatpush2.bf16.msra.mxu0 %v1525
        %1763 = vmatprep.subr.bf16.mxu0 0
        %1764 = vmatpush2.bf16.msra.mxu0 %v1524
        %1765 = vmatprep.subr.bf16.mxu0 0
        %1766 = vmatpush2.bf16.msra.mxu0 %v1523
        %1767 = vmatprep.subr.bf16.mxu0 0
        %1768 = vmatpush2.bf16.msra.mxu0 %v1522
        %1769 = vmatprep.subr.bf16.mxu0 0
        %1770 = vmatpush2.bf16.msra.mxu0 %v1521
        %1771 = vmatprep.mubr.bf16.mxu0 %v1724
        %1772 = vmatmul.mubr.bf16.gmra.mxu0 %v1723
        %v1773 = vpop.f32.mrf.mxu0
        %v1774 = vadd.f32 %v1685, %v1773
        %v1775 = vpop.f32.mrf.mxu0
        %v1776 = vpop.f32.mrf.mxu0
        %v1777 = vadd.f32 %v1688, %v1776
        %v1778 = vpop.f32.mrf.mxu0
        %1779 = vmatprep.mubr.bf16.mxu0 %v1728
        %1780 = vmatmul.mubr.bf16.gmra.mxu0 %v1727
        %v1781 = vpop.f32.mrf.mxu0
        %v1782 = vadd.f32 %v1693, %v1781
        %v1783 = vpop.f32.mrf.mxu0
        %v1784 = vpop.f32.mrf.mxu0
        %v1785 = vadd.f32 %v1696, %v1784
        %v1786 = vpop.f32.mrf.mxu0
        %1787 = vdwg.mxu0
        %1788 = vmatprep.subr.bf16.mxu0 0
        %1789 = vmatpush1.bf16.msra.mxu0 %v1536
        %1790 = vmatprep.subr.bf16.mxu0 0
        %1791 = vmatpush1.bf16.msra.mxu0 %v1535
        %1792 = vmatprep.subr.bf16.mxu0 0
        %1793 = vmatpush1.bf16.msra.mxu0 %v1534
        %1794 = vmatprep.subr.bf16.mxu0 0
        %1795 = vmatpush1.bf16.msra.mxu0 %v1533
        %1796 = vmatprep.subr.bf16.mxu0 0
        %1797 = vmatpush1.bf16.msra.mxu0 %v1532
        %1798 = vmatprep.subr.bf16.mxu0 0
        %1799 = vmatpush1.bf16.msra.mxu0 %v1531
        %1800 = vmatprep.subr.bf16.mxu0 0
        %1801 = vmatpush1.bf16.msra.mxu0 %v1530
        %1802 = vmatprep.subr.bf16.mxu0 0
        %1803 = vmatpush1.bf16.msra.mxu0 %v1529
        %1804 = vmatprep.subr.bf16.mxu0 0
        %1805 = vmatpush2.bf16.msra.mxu0 %v1544
        %1806 = vmatprep.subr.bf16.mxu0 0
        %1807 = vmatpush2.bf16.msra.mxu0 %v1543
        %1808 = vmatprep.subr.bf16.mxu0 0
        %1809 = vmatpush2.bf16.msra.mxu0 %v1542
        %1810 = vmatprep.subr.bf16.mxu0 0
        %1811 = vmatpush2.bf16.msra.mxu0 %v1541
        %1812 = vmatprep.subr.bf16.mxu0 0
        %1813 = vmatpush2.bf16.msra.mxu0 %v1540
        %1814 = vmatprep.subr.bf16.mxu0 0
        %1815 = vmatpush2.bf16.msra.mxu0 %v1539
        %1816 = vmatprep.subr.bf16.mxu0 0
        %1817 = vmatpush2.bf16.msra.mxu0 %v1538
        %1818 = vmatprep.subr.bf16.mxu0 0
        %1819 = vmatpush2.bf16.msra.mxu0 %v1537
        %1820 = vmatprep.mubr.bf16.mxu0 %v1726
        %1821 = vmatmul.mubr.bf16.gmra.mxu0 %v1725
        %v1822 = vpop.f32.mrf.mxu0
        %v1823 = vadd.f32 %v1774, %v1822
        %v1824 = vpop.f32.mrf.mxu0
        %v1825 = vpop.f32.mrf.mxu0
        %v1826 = vadd.f32 %v1777, %v1825
        %v1827 = vpop.f32.mrf.mxu0
        %1828 = vmatprep.mubr.bf16.mxu0 %v1730
        %1829 = vmatmul.mubr.bf16.gmra.mxu0 %v1729
        %v1830 = vpop.f32.mrf.mxu0
        %v1831 = vadd.f32 %v1782, %v1830
        %v1832 = vpop.f32.mrf.mxu0
        %v1833 = vpop.f32.mrf.mxu0
        %v1834 = vadd.f32 %v1785, %v1833
        %v1835 = vpop.f32.mrf.mxu0
        %1836 = vdwg.mxu0
        %1837 = vst [vmem:[%s293] sm:$0xff] %v1823
        %1838 = vst [vmem:[%s293 + $0x8] sm:$0xff] %v1826
        %1839 = vst [vmem:[%s293 + $0x10] sm:$0xff] %v1831
        %1840 = vst [vmem:[%s293 + $0x18] sm:$0xff] %v1834
        %1841 = vst [vmem:[%s299] sm:$0x1] %v1320
        %s1842 = sand.u32 %s136, 1
        %s1843 = scalar_lea.sflag [#allocation4], %s1842
        %s1844 = sand.u32 %s136, 1
        %s1845 = smul.addr %s1844, 32
        %s1846 = scalar_lea.vmem [#allocation3], %s1845
        %s1847 = sand.u32 %s164, 1
        %s1848 = scalar_lea.sflag [#allocation6], %s1847
        %s1849 = sand.u32 %s164, 1
        %s1850 = scalar_lea.vmem [#allocation5], %s1849
        // Predicated region
        $region75: #{tpu_custom_call.1} parent=69 // pred_check
          %p1851 = pneg %p146
        $region76: #{tpu_custom_call.1} parent=69 // pred_check_branch
          %1853 = sbr.rel (%p1851) target = $region78
        $region77: #{tpu_custom_call.1} parent=69 // pred_region
          %s1855 = ssub.s32 512, 512
          %1856 = vsyncadd %s1843, %s1855
          %s1857 = smul.addr %s27, 8
          %s1858 = sadd.s32 %s28, %s1857
          %s1859 = smul.addr %s1858, 128
          %s1860 = scalar_lea.hbm %s4, %s1859
          %s1861 = sshll.u32 %s1846, 4
          %s1862 = int_to_ptr.vmem [resolvable:$true] %s1861
          %1867 = dma.vmem_to_hbm [thread:$0]  %s1862, 512, %s1860, %s1843, 128, 256, 8
        $region78: #{tpu_custom_call.1} parent=69 // pred_fallthru
          _
        // Predicated region
        $region79: #{tpu_custom_call.1} parent=69 // pred_check
          %p1868 = pneg %p174
        $region80: #{tpu_custom_call.1} parent=69 // pred_check_branch
          %1870 = sbr.rel (%p1868) target = $region82
        $region81: #{tpu_custom_call.1} parent=69 // pred_region
          %s1872 = ssub.s32 16, 16
          %1873 = vsyncadd %s1848, %s1872
          %s1874 = smul.addr %s27, 2
          %s1875 = sadd.s32 %s28, %s1874
          %s1876 = smul.addr %s1875, 16
          %s1877 = scalar_lea.hbm %s5, %s1876
          %s1879 = sshll.u32 %s1850, 4
          %s1880 = int_to_ptr.vmem [resolvable:$true] %s1879
          %1882 = dma.vmem_to_hbm [thread:$0]  %s1880, 16, %s1877, %s1848
        $region82: #{tpu_custom_call.1} parent=69 // pred_fallthru
          _
      $region70: #{tpu_custom_call.1} parent=5 // pred_fallthru
        _
      %p1883 = scmp.le.s32.totalorder 2, %s18
      // Predicated region
      $region83: #{tpu_custom_call.1} parent=5 // pred_check
        %p1884 = pneg %p1883
      $region84: #{tpu_custom_call.1} parent=5 // pred_check_branch
        %1886 = sbr.rel (%p1884) target = $region86
      $region85: #{tpu_custom_call.1} parent=5 // pred_region
        %s1887 = ssub.s32 %s18, 2
        // Predicated region
        $region87: #{tpu_custom_call.1} parent=85 // pred_check
          %p1888 = pneg %p152
        $region88: #{tpu_custom_call.1} parent=85 // pred_check_branch
          %1890 = sbr.rel (%p1888) target = $region90
        $region89: #{tpu_custom_call.1} parent=85 // pred_region
          %s1891 = sand.u32 %s137, 1
          %s1892 = scalar_lea.sflag [#allocation4], %s1891
          %s1893 = sand.u32 %s137, 1
          %s1894 = smul.addr %s1893, 32
          %s1895 = scalar_lea.vmem [#allocation3], %s1894
          %1896 = dma.done %s1892, 512
        $region90: #{tpu_custom_call.1} parent=85 // pred_fallthru
          _
        // Predicated region
        $region91: #{tpu_custom_call.1} parent=85 // pred_check
          %p1897 = pneg %p180
        $region92: #{tpu_custom_call.1} parent=85 // pred_check_branch
          %1899 = sbr.rel (%p1897) target = $region94
        $region93: #{tpu_custom_call.1} parent=85 // pred_region
          %s1900 = sand.u32 %s165, 1
          %s1901 = scalar_lea.sflag [#allocation6], %s1900
          %s1902 = sand.u32 %s165, 1
          %s1903 = scalar_lea.vmem [#allocation5], %s1902
          %1904 = dma.done %s1901, 16
        $region94: #{tpu_custom_call.1} parent=85 // pred_fallthru
          _
      $region86: #{tpu_custom_call.1} parent=5 // pred_fallthru
        _
    $region6: #{tpu_custom_call.1} parent=1 // loop_footer
      %s22 = sadd.s32 1, %s18
    $region7: #{tpu_custom_call.1} parent=1 // loop_footer_branch
      %17 = sbr.rel target = $region3
    $region8: #{tpu_custom_call.1} parent=1 // loop_exit
      _
    %1905 = vsyncpa [#allocation4], 1
    %s1906 = scalar_lea.sflag [#allocation4], 1
    %1907 = vsyncpa %s1906, 1
    %1908 = vsyncpa [#allocation6], 1
    %s1909 = scalar_lea.sflag [#allocation6], 1
    %1910 = vsyncpa %s1909, 1

</llo_original>
